<compile_context>
chip_gen: v7x
topology: tpu7x:2x2x1
jax: 0.10.0
libtpu: 0.0.40
codegen_flags: <defaults>
</compile_context>

<pallas_src>
import functools
import math

import jax
import jax.numpy as jnp
from jax.experimental import pallas as pl
from jax.experimental.pallas import tpu as pltpu


def _round_up(a, b):
    return (a + b - 1) // b * b


# ---------------------------------------------------------------------------
# Kernel
# ---------------------------------------------------------------------------
def _conv3x3_kernel(x_ref, w_ref, o_ref, col_ref, *, height, width, c_in_pad):
    """Conv2d(3x3, pad=1, no bias) on a block of whole frames.

    x_ref:   [1, c_in,  TL]       TL = frames_per_block * height * width
    w_ref:   [c_out, 9*c_in_pad]  tap-major (dy, dx), channel-padded to 8
    o_ref:   [1, c_out, TL]
    col_ref: [9*c_in_pad, TL]     im2col slab, INPUT dtype, 8-sublane-aligned taps
    """
    c_in = x_ref.shape[1]
    tl = x_ref.shape[2]
    pad_rows = c_in_pad - c_in

    x = x_ref[0]                                     # [c_in, TL], native dtype

    # Per-pixel (y, x) position inside its own frame.  Frames are concatenated
    # along the lane axis, so positions repeat every height*width lanes.
    # Built once at (1, TL) and broadcast against every tap; shift/and replace
    # div/mod when the frame dims are powers of two.
    pos = jax.lax.broadcasted_iota(jnp.int32, (1, tl), 1)
    if width & (width - 1) == 0:
        px = jnp.bitwise_and(pos, width - 1)
        row = jnp.right_shift(pos, width.bit_length() - 1)
    else:
        px = pos % width
        row = pos // width
    if height & (height - 1) == 0:
        py = jnp.bitwise_and(row, height - 1)
    else:
        py = row % height

    not_top = py >= 1
    not_bottom = py <= height - 2
    not_left = px >= 1
    not_right = px <= width - 2
    row_masks = (not_top, None, not_bottom)
    col_masks = (not_left, None, not_right)

    zpad = None
    if pad_rows:
        # Hoisted once and reused by all 9 taps (JAX does not CSE broadcasts).
        zpad = jnp.zeros((pad_rows, tl), dtype=x.dtype)

    # Build the im2col slab: tap (dy, dx) of the 3x3 stencil is a roll of the
    # flattened spatial axis by (dy-1)*width + (dx-1) lanes.  Anything a roll
    # drags across a row / frame / block boundary is exactly what the implicit
    # zero padding would have zeroed, so the boundary masks fix it up.
    for dy in range(3):
        for dx in range(3):
            shift = (dy - 1) * width + (dx - 1)
            if shift == 0:
                tap_val = x
            else:
                # result[p] = x[(p + shift) mod TL]   (np.roll convention)
                tap_val = pltpu.roll(x, (-shift) % tl, 1)
            mask = row_masks[dy]
            if col_masks[dx] is not None:
                mask = col_masks[dx] if mask is None else jnp.logical_and(
                    mask, col_masks[dx])
            if mask is not None:
                tap_val = jnp.where(mask, tap_val, 0)
            if pad_rows:
                tap_val = jnp.concatenate([tap_val, zpad], axis=0)
            tap = dy * 3 + dx
            # 8-sublane-aligned, full-tile, WAW-free store of this tap's slot.
            col_ref[tap * c_in_pad:(tap + 1) * c_in_pad, :] = tap_val

    # Single fat-K MXU matmul: [c_out, 9*c_in_pad] @ [9*c_in_pad, TL], f32 acc.
    acc = jnp.dot(w_ref[...], col_ref[...], preferred_element_type=jnp.float32)
    o_ref[0] = acc.astype(o_ref.dtype)               # lane-dense store


# ---------------------------------------------------------------------------
# Host-side tiling decisions (generation aware)
# ---------------------------------------------------------------------------
def _tpu_hardware_info():
    """Returns (per-core VMEM capacity bytes, # TensorCores sharing the grid)."""
    vmem_bytes = 128 * 1024 * 1024
    num_cores = 1
    try:
        info = pltpu.get_tpu_info()
        v = getattr(info, "vmem_capacity_bytes", None)
        if v:
            vmem_bytes = int(v)
    except Exception:
        pass
    try:
        kind = jax.devices()[0].device_kind.lower()
        if "v7" in kind:        # v7x has two TensorCores per chip
            num_cores = 2
    except Exception:
        pass
    return vmem_bytes, num_cores


def _choose_tiling(n, s, hw, per_frame_bytes, num_cores, block_budget_bytes):
    """Pick frames-per-block `tb` and padded sequence length `s_pad`.

    Guarantees: tb divides s_pad, tb*hw is a multiple of 128 (lane-dense
    blocks) whenever possible, the block fits the VMEM budget when possible,
    and on multi-TensorCore chips the total number of parallel grid steps
    divides evenly across cores when a valid choice exists.
    """
    g = 128 // math.gcd(hw, 128)           # min frames for a lane-dense block
    max_tb = max(1, int(block_budget_bytes // max(1, per_frame_bytes)))

    dense_divs = [d for d in range(1, s + 1)
                  if s % d == 0 and (d * hw) % 128 == 0]
    in_budget = [d for d in dense_divs if d <= max_tb]

    if in_budget:
        candidates = sorted(in_budget, reverse=True)
        tb, s_pad = candidates[0], s
    elif dense_divs:
        tb, s_pad = min(dense_divs), s      # smallest dense divisor; over budget
        candidates = [tb]
    else:
        # No divisor of s gives a lane-dense block: pad the set axis with zero
        # frames so every block stays whole-frame AND lane-dense.
        tb = max(g, min(_round_up(s, g), (max_tb // g) * g))
        s_pad = _round_up(s, tb)
        candidates = list(range(tb, 0, -g))

    if num_cores > 1:
        def n_steps(t, sp):
            return n * (sp // t)

        def balanced(t, sp):
            st = n_steps(t, sp)
            return st >= num_cores and st % num_cores == 0

        if not balanced(tb, s_pad):
            for t in candidates:
                sp = s if s % t == 0 else _round_up(s, t)
                if balanced(t, sp):
                    tb, s_pad = t, sp
                    break
    return tb, s_pad


# ---------------------------------------------------------------------------
# pallas_call wrapper
# ---------------------------------------------------------------------------
def conv3x3_setblock_pallas(x_flat, w_mat, height, width, frames_per_block,
                            c_in_pad, vmem_limit_bytes):
    """x_flat: [n, c_in, s_pad*h*w] (frames contiguous); w_mat: [c_out, 9*c_in_pad]."""
    n, c_in, length = x_flat.shape
    c_out = w_mat.shape[0]
    hw = height * width
    tl = frames_per_block * hw
    grid = (n, length // tl)

    kernel = functools.partial(_conv3x3_kernel, height=height, width=width,
                               c_in_pad=c_in_pad)
    itemsize = jnp.dtype(x_flat.dtype).itemsize
    flops = 2 * n * length * 9 * c_in * c_out
    bytes_accessed = ((n * c_in * length + n * c_out * length) * itemsize
                      + w_mat.size * jnp.dtype(w_mat.dtype).itemsize)

    return pl.pallas_call(
        kernel,
        out_shape=jax.ShapeDtypeStruct((n, c_out, length), x_flat.dtype),
        grid=grid,
        in_specs=[
            pl.BlockSpec((1, c_in, tl), lambda i, j: (i, 0, j)),
            pl.BlockSpec((c_out, 9 * c_in_pad), lambda i, j: (0, 0)),
        ],
        out_specs=pl.BlockSpec((1, c_out, tl), lambda i, j: (i, 0, j)),
        scratch_shapes=[pltpu.VMEM((9 * c_in_pad, tl), x_flat.dtype)],
        compiler_params=pltpu.CompilerParams(
            dimension_semantics=("parallel", "parallel"),
            vmem_limit_bytes=int(vmem_limit_bytes)),
        cost_estimate=pl.CostEstimate(
            flops=flops, transcendentals=0, bytes_accessed=bytes_accessed),
    )(x_flat, w_mat)


@jax.jit
def set_block_wrapper_forward(x, weight):
    """SetBlockWrapper.forward with forward_block = Conv2d(3x3, pad=1, no bias).

    x:      [n, c_in, s, h, w]   (PyTorch NCSHW convention)
    weight: [c_out, c_in, 3, 3]  (PyTorch OIHW convention)
    returns [n, c_out, s, h, w]
    """
    n, c_in, s, h, w = x.shape
    c_out = weight.shape[0]
    hw = h * w
    c_in_pad = _round_up(c_in, 8)

    # The conv treats (n, s) purely as batch, so the SetBlockWrapper merge /
    # un-merge transposes are unnecessary; flatten (s, h, w) into one
    # contiguous lane axis with a free, metadata-only reshape.
    x_flat = x.reshape(n, c_in, s * hw)

    # OIHW -> [c_out, (dy, dx, c_in_pad)] flat weights, input-channel-padded so
    # every im2col tap slot starts on an 8-sublane boundary.  The pad columns
    # are exact zeros, so the matching (zeroed) slab rows contribute nothing.
    w_taps = jnp.transpose(weight, (0, 2, 3, 1)).astype(x.dtype)  # (c_out,3,3,c_in)
    w_taps = jnp.pad(w_taps, ((0, 0), (0, 0), (0, 0), (0, c_in_pad - c_in)))
    w_mat = w_taps.reshape(c_out, 9 * c_in_pad)

    # Generation-aware tiling: block budget from the actual per-core VMEM
    # (64 MiB v7x vs 128 MiB v5e/v6e), grid steps balanced across TensorCores.
    vmem_bytes, num_cores = _tpu_hardware_info()
    block_budget = min(24 << 20, vmem_bytes // 5)
    vmem_limit = min(64 << 20, vmem_bytes // 2)
    in_isz = jnp.dtype(x.dtype).itemsize
    per_frame = hw * (2 * c_in * in_isz            # double-buffered input block
                      + 2 * c_out * in_isz         # double-buffered output block
                      + 9 * c_in_pad * in_isz      # im2col slab (input dtype)
                      + 4 * c_in * 4)              # roll/mask temporaries
    tb, s_pad = _choose_tiling(n, s, hw, per_frame, num_cores, block_budget)

    if s_pad != s:  # pad the set axis with zero frames to keep blocks lane-dense
        x_flat = jnp.pad(x_flat, ((0, 0), (0, 0), (0, (s_pad - s) * hw)))

    out_flat = conv3x3_setblock_pallas(x_flat, w_mat, h, w, tb, c_in_pad,
                                       vmem_limit)
    if s_pad != s:
        out_flat = out_flat[:, :, :s * hw]
    return out_flat.reshape(n, c_out, s, h, w)


# ---------------------------------------------------------------------------
# Pure-JAX reference & test
# ---------------------------------------------------------------------------
def _reference_forward(x, weight):
    """Pure-JAX reference of the same computation (XLA conv)."""
    n, c_in, s, h, w = x.shape
    c_out = weight.shape[0]
    x4 = jnp.transpose(x, (0, 2, 1, 3, 4)).reshape(n * s, c_in, h, w)
    out = jax.lax.conv_general_dilated(
        x4, weight, window_strides=(1, 1), padding="SAME",
        dimension_numbers=("NCHW", "OIHW", "NCHW"))
    return jnp.transpose(out.reshape(n, s, c_out, h, w), (0, 2, 1, 3, 4))


if __name__ == "__main__":
    key = jax.random.PRNGKey(0)
    kx, kw = jax.random.split(key)

    n, c_in, s, h, w = 2, 4, 8, 16, 16
    c_out = 8

    x = jax.random.normal(kx, (n, c_in, s, h, w), dtype=jnp.float32)
    # Deterministic synthetic Conv2d weight (no bias), shape [c_out, c_in, 3, 3].
    weight = jax.random.normal(kw, (c_out, c_in, 3, 3), dtype=jnp.float32) * 0.1

    out = jax.block_until_ready(set_block_wrapper_forward(x, weight))
    ref = jax.block_until_ready(_reference_forward(x, weight))

    assert out.shape == (n, c_out, s, h, w), out.shape
    assert jnp.allclose(out, ref, atol=1e-4, rtol=1e-4), "mismatch vs reference"

    print("KERNEL_OK")
</pallas_src>

<mosaic_0001>
module attributes {stable_mosaic.version = 11 : i64} {
  func.func @_conv3x3_kernel(%arg0: i32, %arg1: i32, %arg2: memref<1x4x2048xf32, #tpu.memory_space<vmem>>, %arg3: memref<8x72xf32, #tpu.memory_space<vmem>>, %arg4: memref<1x8x2048xf32, #tpu.memory_space<vmem>>, %arg5: memref<72x2048xf32, #tpu.memory_space<vmem>>) attributes {dimension_semantics = [#tpu.dimension_semantics<parallel>, #tpu.dimension_semantics<parallel>], iteration_bounds = array<i64: 2, 1>, scalar_prefetch = 0 : i64, scratch_operands = 1 : i64, tpu.core_type = #tpu.core_type<tc>, window_params = [{transform_indices = @transform_0, window_bounds = array<i64: 1, 4, 2048>}, {pipeline_mode = #tpu.pipeline_mode<synchronous>, transform_indices = @transform_1, window_bounds = array<i64: 8, 72>}, {transform_indices = @transform_2, window_bounds = array<i64: 1, 8, 2048>}]} {
    %c0 = arith.constant 0 : index
    %c0_0 = arith.constant 0 : index
    %c0_1 = arith.constant 0 : index
    %0 = vector.load %arg2[%c0, %c0_0, %c0_1] : memref<1x4x2048xf32, #tpu.memory_space<vmem>>, vector<1x4x2048xf32>
    %1 = vector.shape_cast %0 : vector<1x4x2048xf32> to vector<4x2048xf32>
    %2 = tpu.iota {dimensions = array<i32: 1>} : vector<1x2048xi32>
    %c15_i32 = arith.constant 15 : i32
    %3 = vector.broadcast %c15_i32 : i32 to vector<1x2048xi32>
    %4 = arith.andi %2, %3 : vector<1x2048xi32>
    %c4_i32 = arith.constant 4 : i32
    %5 = vector.broadcast %c4_i32 : i32 to vector<1x2048xi32>
    %6 = arith.shrsi %2, %5 : vector<1x2048xi32>
    %c15_i32_2 = arith.constant 15 : i32
    %7 = vector.broadcast %c15_i32_2 : i32 to vector<1x2048xi32>
    %8 = arith.andi %6, %7 : vector<1x2048xi32>
    %c1_i32 = arith.constant 1 : i32
    %9 = vector.broadcast %c1_i32 : i32 to vector<1x2048xi32>
    %10 = arith.cmpi sge, %8, %9 : vector<1x2048xi32>
    %c14_i32 = arith.constant 14 : i32
    %11 = vector.broadcast %c14_i32 : i32 to vector<1x2048xi32>
    %12 = arith.cmpi sle, %8, %11 : vector<1x2048xi32>
    %c1_i32_3 = arith.constant 1 : i32
    %13 = vector.broadcast %c1_i32_3 : i32 to vector<1x2048xi32>
    %14 = arith.cmpi sge, %4, %13 : vector<1x2048xi32>
    %c14_i32_4 = arith.constant 14 : i32
    %15 = vector.broadcast %c14_i32_4 : i32 to vector<1x2048xi32>
    %16 = arith.cmpi sle, %4, %15 : vector<1x2048xi32>
    %cst = arith.constant 0.000000e+00 : f32
    %17 = vector.broadcast %cst : f32 to vector<4x2048xf32>
    %c17_i32 = arith.constant 17 : i32
    %18 = tpu.dynamic_rotate %1 by %c17_i32 dim 1 : vector<4x2048xf32>, i32 -> vector<4x2048xf32>
    %19 = arith.andi %10, %14 : vector<1x2048xi1>
    %c0_i32 = arith.constant 0 : i32
    %20 = arith.sitofp %c0_i32 : i32 to f32
    %21 = vector.shape_cast %19 : vector<1x2048xi1> to vector<1x2048xi1>
    %22 = vector.broadcast %21 : vector<1x2048xi1> to vector<4x2048xi1>
    %23 = vector.broadcast %20 : f32 to vector<4x2048xf32>
    %24 = arith.select %22, %18, %23 : vector<4x2048xi1>, vector<4x2048xf32>
    %25 = tpu.concatenate %24, %17 in 0 : vector<4x2048xf32>, vector<4x2048xf32> -> vector<8x2048xf32>
    %c0_5 = arith.constant 0 : index
    %c0_6 = arith.constant 0 : index
    %26 = vector.load %arg5[%c0_5, %c0_6] : memref<72x2048xf32, #tpu.memory_space<vmem>>, vector<8x2048xf32>
    tpu.vector_store %arg5[%c0_5, %c0_6], %25 {strides = array<i32>} : memref<72x2048xf32, #tpu.memory_space<vmem>>, vector<8x2048xf32>,
    %c16_i32 = arith.constant 16 : i32
    %27 = tpu.dynamic_rotate %1 by %c16_i32 dim 1 : vector<4x2048xf32>, i32 -> vector<4x2048xf32>
    %c0_i32_7 = arith.constant 0 : i32
    %28 = arith.sitofp %c0_i32_7 : i32 to f32
    %29 = vector.shape_cast %10 : vector<1x2048xi1> to vector<1x2048xi1>
    %30 = vector.broadcast %29 : vector<1x2048xi1> to vector<4x2048xi1>
    %31 = vector.broadcast %28 : f32 to vector<4x2048xf32>
    %32 = arith.select %30, %27, %31 : vector<4x2048xi1>, vector<4x2048xf32>
    %33 = tpu.concatenate %32, %17 in 0 : vector<4x2048xf32>, vector<4x2048xf32> -> vector<8x2048xf32>
    %c8 = arith.constant 8 : index
    %c0_8 = arith.constant 0 : index
    %34 = vector.load %arg5[%c8, %c0_8] : memref<72x2048xf32, #tpu.memory_space<vmem>>, vector<8x2048xf32>
    tpu.vector_store %arg5[%c8, %c0_8], %33 {strides = array<i32>} : memref<72x2048xf32, #tpu.memory_space<vmem>>, vector<8x2048xf32>,
    %c15_i32_9 = arith.constant 15 : i32
    %35 = tpu.dynamic_rotate %1 by %c15_i32_9 dim 1 : vector<4x2048xf32>, i32 -> vector<4x2048xf32>
    %36 = arith.andi %10, %16 : vector<1x2048xi1>
    %c0_i32_10 = arith.constant 0 : i32
    %37 = arith.sitofp %c0_i32_10 : i32 to f32
    %38 = vector.shape_cast %36 : vector<1x2048xi1> to vector<1x2048xi1>
    %39 = vector.broadcast %38 : vector<1x2048xi1> to vector<4x2048xi1>
    %40 = vector.broadcast %37 : f32 to vector<4x2048xf32>
    %41 = arith.select %39, %35, %40 : vector<4x2048xi1>, vector<4x2048xf32>
    %42 = tpu.concatenate %41, %17 in 0 : vector<4x2048xf32>, vector<4x2048xf32> -> vector<8x2048xf32>
    %c16 = arith.constant 16 : index
    %c0_11 = arith.constant 0 : index
    %43 = vector.load %arg5[%c16, %c0_11] : memref<72x2048xf32, #tpu.memory_space<vmem>>, vector<8x2048xf32>
    tpu.vector_store %arg5[%c16, %c0_11], %42 {strides = array<i32>} : memref<72x2048xf32, #tpu.memory_space<vmem>>, vector<8x2048xf32>,
    %c1_i32_12 = arith.constant 1 : i32
    %44 = tpu.dynamic_rotate %1 by %c1_i32_12 dim 1 : vector<4x2048xf32>, i32 -> vector<4x2048xf32>
    %c0_i32_13 = arith.constant 0 : i32
    %45 = arith.sitofp %c0_i32_13 : i32 to f32
    %46 = vector.shape_cast %14 : vector<1x2048xi1> to vector<1x2048xi1>
    %47 = vector.broadcast %46 : vector<1x2048xi1> to vector<4x2048xi1>
    %48 = vector.broadcast %45 : f32 to vector<4x2048xf32>
    %49 = arith.select %47, %44, %48 : vector<4x2048xi1>, vector<4x2048xf32>
    %50 = tpu.concatenate %49, %17 in 0 : vector<4x2048xf32>, vector<4x2048xf32> -> vector<8x2048xf32>
    %c24 = arith.constant 24 : index
    %c0_14 = arith.constant 0 : index
    %51 = vector.load %arg5[%c24, %c0_14] : memref<72x2048xf32, #tpu.memory_space<vmem>>, vector<8x2048xf32>
    tpu.vector_store %arg5[%c24, %c0_14], %50 {strides = array<i32>} : memref<72x2048xf32, #tpu.memory_space<vmem>>, vector<8x2048xf32>,
    %52 = tpu.concatenate %1, %17 in 0 : vector<4x2048xf32>, vector<4x2048xf32> -> vector<8x2048xf32>
    %c32 = arith.constant 32 : index
    %c0_15 = arith.constant 0 : index
    %53 = vector.load %arg5[%c32, %c0_15] : memref<72x2048xf32, #tpu.memory_space<vmem>>, vector<8x2048xf32>
    tpu.vector_store %arg5[%c32, %c0_15], %52 {strides = array<i32>} : memref<72x2048xf32, #tpu.memory_space<vmem>>, vector<8x2048xf32>,
    %c2047_i32 = arith.constant 2047 : i32
    %54 = tpu.dynamic_rotate %1 by %c2047_i32 dim 1 : vector<4x2048xf32>, i32 -> vector<4x2048xf32>
    %c0_i32_16 = arith.constant 0 : i32
    %55 = arith.sitofp %c0_i32_16 : i32 to f32
    %56 = vector.shape_cast %16 : vector<1x2048xi1> to vector<1x2048xi1>
    %57 = vector.broadcast %56 : vector<1x2048xi1> to vector<4x2048xi1>
    %58 = vector.broadcast %55 : f32 to vector<4x2048xf32>
    %59 = arith.select %57, %54, %58 : vector<4x2048xi1>, vector<4x2048xf32>
    %60 = tpu.concatenate %59, %17 in 0 : vector<4x2048xf32>, vector<4x2048xf32> -> vector<8x2048xf32>
    %c40 = arith.constant 40 : index
    %c0_17 = arith.constant 0 : index
    %61 = vector.load %arg5[%c40, %c0_17] : memref<72x2048xf32, #tpu.memory_space<vmem>>, vector<8x2048xf32>
    tpu.vector_store %arg5[%c40, %c0_17], %60 {strides = array<i32>} : memref<72x2048xf32, #tpu.memory_space<vmem>>, vector<8x2048xf32>,
    %c2033_i32 = arith.constant 2033 : i32
    %62 = tpu.dynamic_rotate %1 by %c2033_i32 dim 1 : vector<4x2048xf32>, i32 -> vector<4x2048xf32>
    %63 = arith.andi %12, %14 : vector<1x2048xi1>
    %c0_i32_18 = arith.constant 0 : i32
    %64 = arith.sitofp %c0_i32_18 : i32 to f32
    %65 = vector.shape_cast %63 : vector<1x2048xi1> to vector<1x2048xi1>
    %66 = vector.broadcast %65 : vector<1x2048xi1> to vector<4x2048xi1>
    %67 = vector.broadcast %64 : f32 to vector<4x2048xf32>
    %68 = arith.select %66, %62, %67 : vector<4x2048xi1>, vector<4x2048xf32>
    %69 = tpu.concatenate %68, %17 in 0 : vector<4x2048xf32>, vector<4x2048xf32> -> vector<8x2048xf32>
    %c48 = arith.constant 48 : index
    %c0_19 = arith.constant 0 : index
    %70 = vector.load %arg5[%c48, %c0_19] : memref<72x2048xf32, #tpu.memory_space<vmem>>, vector<8x2048xf32>
    tpu.vector_store %arg5[%c48, %c0_19], %69 {strides = array<i32>} : memref<72x2048xf32, #tpu.memory_space<vmem>>, vector<8x2048xf32>,
    %c2032_i32 = arith.constant 2032 : i32
    %71 = tpu.dynamic_rotate %1 by %c2032_i32 dim 1 : vector<4x2048xf32>, i32 -> vector<4x2048xf32>
    %c0_i32_20 = arith.constant 0 : i32
    %72 = arith.sitofp %c0_i32_20 : i32 to f32
    %73 = vector.shape_cast %12 : vector<1x2048xi1> to vector<1x2048xi1>
    %74 = vector.broadcast %73 : vector<1x2048xi1> to vector<4x2048xi1>
    %75 = vector.broadcast %72 : f32 to vector<4x2048xf32>
    %76 = arith.select %74, %71, %75 : vector<4x2048xi1>, vector<4x2048xf32>
    %77 = tpu.concatenate %76, %17 in 0 : vector<4x2048xf32>, vector<4x2048xf32> -> vector<8x2048xf32>
    %c56 = arith.constant 56 : index
    %c0_21 = arith.constant 0 : index
    %78 = vector.load %arg5[%c56, %c0_21] : memref<72x2048xf32, #tpu.memory_space<vmem>>, vector<8x2048xf32>
    tpu.vector_store %arg5[%c56, %c0_21], %77 {strides = array<i32>} : memref<72x2048xf32, #tpu.memory_space<vmem>>, vector<8x2048xf32>,
    %c2031_i32 = arith.constant 2031 : i32
    %79 = tpu.dynamic_rotate %1 by %c2031_i32 dim 1 : vector<4x2048xf32>, i32 -> vector<4x2048xf32>
    %80 = arith.andi %12, %16 : vector<1x2048xi1>
    %c0_i32_22 = arith.constant 0 : i32
    %81 = arith.sitofp %c0_i32_22 : i32 to f32
    %82 = vector.shape_cast %80 : vector<1x2048xi1> to vector<1x2048xi1>
    %83 = vector.broadcast %82 : vector<1x2048xi1> to vector<4x2048xi1>
    %84 = vector.broadcast %81 : f32 to vector<4x2048xf32>
    %85 = arith.select %83, %79, %84 : vector<4x2048xi1>, vector<4x2048xf32>
    %86 = tpu.concatenate %85, %17 in 0 : vector<4x2048xf32>, vector<4x2048xf32> -> vector<8x2048xf32>
    %c64 = arith.constant 64 : index
    %c0_23 = arith.constant 0 : index
    %87 = vector.load %arg5[%c64, %c0_23] : memref<72x2048xf32, #tpu.memory_space<vmem>>, vector<8x2048xf32>
    tpu.vector_store %arg5[%c64, %c0_23], %86 {strides = array<i32>} : memref<72x2048xf32, #tpu.memory_space<vmem>>, vector<8x2048xf32>,
    %c0_24 = arith.constant 0 : index
    %c0_25 = arith.constant 0 : index
    %88 = vector.load %arg3[%c0_24, %c0_25] : memref<8x72xf32, #tpu.memory_space<vmem>>, vector<8x72xf32>
    %c0_26 = arith.constant 0 : index
    %c0_27 = arith.constant 0 : index
    %89 = vector.load %arg5[%c0_26, %c0_27] : memref<72x2048xf32, #tpu.memory_space<vmem>>, vector<72x2048xf32>
    %cst_28 = arith.constant dense<0.000000e+00> : vector<8x2048xf32>
    %90 = tpu.matmul %88, %89, %cst_28 {dimension_numbers = #tpu.dot_dimension_numbers<[1], [0], [0], [1], [0, 0, 1, 1], [], []>} : vector<8x72xf32>, vector<72x2048xf32>, vector<8x2048xf32> -> vector<8x2048xf32>
    %c0_29 = arith.constant 0 : index
    %c0_30 = arith.constant 0 : index
    %c0_31 = arith.constant 0 : index
    %91 = vector.load %arg4[%c0_29, %c0_30, %c0_31] : memref<1x8x2048xf32, #tpu.memory_space<vmem>>, vector<1x8x2048xf32>
    %92 = vector.shape_cast %91 : vector<1x8x2048xf32> to vector<8x2048xf32>
    %93 = vector.shape_cast %90 : vector<8x2048xf32> to vector<1x8x2048xf32>
    tpu.vector_store %arg4[%c0_29, %c0_30, %c0_31], %93 {strides = array<i32>} : memref<1x8x2048xf32, #tpu.memory_space<vmem>>, vector<1x8x2048xf32>,
    return
  }
  func.func @transform_0(%arg0: i32, %arg1: i32) -> (i32, i32, i32) {
    %c0_i32 = arith.constant 0 : i32
    %c0_i32_0 = arith.constant 0 : i32
    return %arg0, %c0_i32, %arg1 : i32, i32, i32
  }
  func.func @transform_1(%arg0: i32, %arg1: i32) -> (i32, i32) {
    %c0_i32 = arith.constant 0 : i32
    %c0_i32_0 = arith.constant 0 : i32
    %c0_i32_1 = arith.constant 0 : i32
    return %c0_i32, %c0_i32_0 : i32, i32
  }
  func.func @transform_2(%arg0: i32, %arg1: i32) -> (i32, i32, i32) {
    %c0_i32 = arith.constant 0 : i32
    %c0_i32_0 = arith.constant 0 : i32
    return %arg0, %c0_i32, %arg1 : i32, i32, i32
  }
}

</mosaic_0001>

<llo_original>
// kernel: set_block_wrapper_forward.1
$region0: #{set_block_wrapper_forward.1}
  #allocation0 [shape = 'u32[]', space=smem, size = 0x4, offset = 0x4, fixed_abs, tag = 'smem constant byte address 0x4 - core index']
  #allocation1 [shape = 'u32[144,128]{1,0:T(1,128)}', space=vmem, size = 0x12000, scoped, tag = 'internal scratch']
  #allocation2 [shape = 'f32[72,2048]{1,0:T(8,128)}', space=vmem, size = 0x90000, scoped, tag = 'scratch operand']
  %s0 = inlined_call_operand.hbm [shape: f32[2,4,2048], index: 0, kind: input, shape index: {}]
  %s1 = inlined_call_operand.hbm [shape: f32[8,72], index: 1, kind: input, shape index: {}]
  %s2 = inlined_call_operand.hbm [shape: f32[2,8,2048], index: 2, kind: output, shape index: {}]
  %s3 = sld [smem:[#allocation0]]
  $region49: #{set_block_wrapper_forward.1} parent=0
    _
  %s5 = ssub.s32 1, %s3
  %s6 = scalar_select 0, %s5, %s3
  $region1: #{set_block_wrapper_forward.1} parent=0
    #allocation3 [shape = 'u8[65536]{0}', space=vmem, size = 0x10000, scoped, tag = 'input window, operand 0']
    #allocation4 [shape = 's32[2]{0}', space=sflag, size = 0x8, scoped, tag = 'scoped memory for set_block_wrapper_forward.1']
    #allocation5 [shape = 's32[2]{0}', space=sflag, size = 0x8, scoped, tag = 'scoped memory for set_block_wrapper_forward.1']
    #allocation6 [shape = 'u8[4096]{0}', space=vmem, size = 0x1000, scoped, tag = 'input window, operand 1, single buffered']
    #allocation7 [shape = 's32[1]{0}', space=sflag, size = 0x4, scoped, tag = 'scoped memory for set_block_wrapper_forward.1']
    #allocation8 [shape = 'u8[131072]{0}', space=vmem, size = 0x20000, scoped, tag = 'output window, operand 0']
    %7 = vsyncpa [#allocation4], 0
    %s8 = scalar_lea.sflag [#allocation4], 1
    %9 = vsyncpa %s8, 0
    %10 = vsyncpa [#allocation7], 0
    %11 = vsyncpa [#allocation5], 0
    %s12 = scalar_lea.sflag [#allocation5], 1
    %13 = vsyncpa %s12, 0
    loop: start=0, step=1, limit=4
    $region2: #{set_block_wrapper_forward.1} parent=1 // loop_pre_header
      _
    $region3: #{set_block_wrapper_forward.1} parent=1 // loop_header
      %s15 = sphi 0, %s19
      %p16 = scmp.ge.s32.totalorder %s15, 4
      %s22 = sphi 0, %s34
      %s23 = sphi 0, %s30
      %s24 = sphi 0, %s22
      %s25 = sphi 0, %s23
      %s26 = sphi 0, %s24
      %s27 = sphi 0, %s25
      %s39 = sphi 0, %s41
      %s42 = sphi 0, %s39
      %s43 = sphi 0, %s42
      %s59 = sphi 0, %s43
      %s63 = sphi 0, %s63
      %s65 = sphi 0, %s63
      %s66 = sphi 0, %s65
      %s80 = sphi 0, %s66
      %s88 = sphi 0, %s90
      %s91 = sphi 0, %s88
      %s92 = sphi 0, %s91
      %s108 = sphi 0, %s92
    $region4: #{set_block_wrapper_forward.1} parent=1 // loop_header_branch
      %18 = sbr.rel (%p16) target = $region8
    $region5: #{set_block_wrapper_forward.1} parent=1 // loop_body
      %s20 = ssub.s32 %s15, 1
      %s21 = ssub.s32 %s15, 2
      %s28 = sadd.s32 1, %s23
      %p29 = scmp.ge.s32.totalorder %s28, 1
      %s30 = scalar_select %p29, 0, %s28
      %s31 = sadd.s32 1, %s22
      %s32 = scalar_select %p29, %s31, %s22
      %p33 = scmp.ge.s32.totalorder %s32, 2
      %s34 = scalar_select %p33, 0, %s32
      %s35 = ssub.s32 %s22, %s34
      %s36 = ssub.s32 %s23, %s30
      %s37 = sor.u32 %s35, %s36
      %p38 = scmp.eq.s32.totalorder %s37, 0
      %s40 = sadd.s32 %s39, 1
      %s41 = scalar_select %p38, %s39, %s40
      %p44 = pneg %p38
      %p45 = scmp.eq.s32.totalorder %s15, 1
      %p46 = por %p44, %p45
      %p47 = scmp.ne.s32.totalorder %s39, %s42
      %p48 = scmp.eq.s32.totalorder %s15, 0
      %p49 = por %p47, %p48
      %p50 = scmp.ne.s32.totalorder %s39, %s42
      %p51 = scmp.eq.s32.totalorder %s20, 1
      %p52 = por %p50, %p51
      %p53 = scmp.ne.s32.totalorder %s42, %s43
      %p54 = scmp.eq.s32.totalorder %s20, 0
      %p55 = por %p53, %p54
      %p56 = scmp.ne.s32.totalorder %s42, %s43
      %p57 = scmp.eq.s32.totalorder %s21, 1
      %p58 = por %p56, %p57
      %p60 = scmp.ne.s32.totalorder %s43, %s59
      %p61 = scmp.eq.s32.totalorder %s21, 0
      %p62 = por %p60, %p61
      %s64 = sadd.s32 %s63, 1
      %p67 = scmp.eq.s32.totalorder %s15, 1
      %p68 = scmp.ne.s32.totalorder %s63, %s65
      %p69 = scmp.eq.s32.totalorder %s15, 0
      %p70 = por %p68, %p69
      %p71 = scmp.ne.s32.totalorder %s63, %s65
      %p72 = scmp.eq.s32.totalorder %s20, 1
      %p73 = por %p71, %p72
      %p74 = scmp.ne.s32.totalorder %s65, %s66
      %p75 = scmp.eq.s32.totalorder %s20, 0
      %p76 = por %p74, %p75
      %p77 = scmp.ne.s32.totalorder %s65, %s66
      %p78 = scmp.eq.s32.totalorder %s21, 1
      %p79 = por %p77, %p78
      %p81 = scmp.ne.s32.totalorder %s66, %s80
      %p82 = scmp.eq.s32.totalorder %s21, 0
      %p83 = por %p81, %p82
      %s84 = ssub.s32 %s22, %s34
      %s85 = ssub.s32 %s23, %s30
      %s86 = sor.u32 %s84, %s85
      %p87 = scmp.eq.s32.totalorder %s86, 0
      %s89 = sadd.s32 %s88, 1
      %s90 = scalar_select %p87, %s88, %s89
      %p93 = pneg %p87
      %p94 = scmp.eq.s32.totalorder %s15, 1
      %p95 = por %p93, %p94
      %p96 = scmp.ne.s32.totalorder %s88, %s91
      %p97 = scmp.eq.s32.totalorder %s15, 0
      %p98 = por %p96, %p97
      %p99 = scmp.ne.s32.totalorder %s88, %s91
      %p100 = scmp.eq.s32.totalorder %s20, 1
      %p101 = por %p99, %p100
      %p102 = scmp.ne.s32.totalorder %s91, %s92
      %p103 = scmp.eq.s32.totalorder %s20, 0
      %p104 = por %p102, %p103
      %p105 = scmp.ne.s32.totalorder %s91, %s92
      %p106 = scmp.eq.s32.totalorder %s21, 1
      %p107 = por %p105, %p106
      %p109 = scmp.ne.s32.totalorder %s92, %s108
      %p110 = scmp.eq.s32.totalorder %s21, 0
      %p111 = por %p109, %p110
      %p112 = scmp.le.s32.totalorder 1, %s15
      %p113 = scmp.lt.s32.totalorder %s15, 3
      %p114 = pnand %p112, %p113
      %p115 = pneg %p114
      // Predicated region
      $region9: #{set_block_wrapper_forward.1} parent=5 // pred_check
        _
      $region10: #{set_block_wrapper_forward.1} parent=5 // pred_check_branch
        %117 = sbr.rel (%p114) target = $region12
      $region11: #{set_block_wrapper_forward.1} parent=5 // pred_region
        %s118 = ssub.s32 %s15, 1
        // Predicated region
        $region13: #{set_block_wrapper_forward.1} parent=11 // pred_check
          %p119 = pneg %p76
        $region14: #{set_block_wrapper_forward.1} parent=11 // pred_check_branch
          %121 = sbr.rel (%p119) target = $region16
        $region15: #{set_block_wrapper_forward.1} parent=11 // pred_region
          %s123 = ssub.s32 128, 128
          %124 = vsyncadd [#allocation7], %s123
          %s126 = sshll.u32 [#allocation6], 4
          %s127 = int_to_ptr.vmem [resolvable:$true] %s126
          %129 = dma.hbm_to_vmem [thread:$0]  %s1, 128, %s127, [#allocation7]
        $region16: #{set_block_wrapper_forward.1} parent=11 // pred_fallthru
          _
      $region12: #{set_block_wrapper_forward.1} parent=5 // pred_fallthru
        _
      %p130 = scmp.lt.s32.totalorder %s15, 2
      // Predicated region
      $region17: #{set_block_wrapper_forward.1} parent=5 // pred_check
        %p131 = pneg %p130
      $region18: #{set_block_wrapper_forward.1} parent=5 // pred_check_branch
        %133 = sbr.rel (%p131) target = $region20
      $region19: #{set_block_wrapper_forward.1} parent=5 // pred_region
        // Predicated region
        $region21: #{set_block_wrapper_forward.1} parent=19 // pred_check
          %p134 = pneg %p49
        $region22: #{set_block_wrapper_forward.1} parent=19 // pred_check_branch
          %136 = sbr.rel (%p134) target = $region24
        $region23: #{set_block_wrapper_forward.1} parent=19 // pred_region
          %s137 = sand.u32 %s39, 1
          %s138 = scalar_lea.sflag [#allocation4], %s137
          %s139 = sand.u32 %s39, 1
          %s140 = smul.addr %s139, 64
          %s141 = scalar_lea.vmem [#allocation3], %s140
          %s142 = smul.u32 16, %s23
          %s144 = ssub.s32 1024, 1024
          %145 = vsyncadd %s138, %s144
          %s146 = smul.addr %s22, 16
          %s147 = sadd.s32 %s142, %s146
          %s148 = smul.addr %s147, 64
          %s149 = scalar_lea.hbm %s0, %s148
          %s151 = sshll.u32 %s141, 4
          %s152 = int_to_ptr.vmem [resolvable:$true] %s151
          %154 = dma.hbm_to_vmem [thread:$0]  %s149, 1024, %s152, %s138
        $region24: #{set_block_wrapper_forward.1} parent=19 // pred_fallthru
          _
      $region20: #{set_block_wrapper_forward.1} parent=5 // pred_fallthru
        _
      %p155 = scmp.le.s32.totalorder 1, %s15
      %p156 = scmp.lt.s32.totalorder %s15, 3
      %p157 = pnand %p155, %p156
      %p158 = pneg %p157
      // Predicated region
      $region25: #{set_block_wrapper_forward.1} parent=5 // pred_check
        _
      $region26: #{set_block_wrapper_forward.1} parent=5 // pred_check_branch
        %160 = sbr.rel (%p157) target = $region28
      $region27: #{set_block_wrapper_forward.1} parent=5 // pred_region
        %s161 = ssub.s32 %s15, 1
        %s162 = sand.u32 %s42, 1
        %s163 = scalar_lea.sflag [#allocation4], %s162
        %s164 = sand.u32 %s42, 1
        %s165 = smul.addr %s164, 64
        %s166 = scalar_lea.vmem [#allocation3], %s165
        // Predicated region
        $region29: #{set_block_wrapper_forward.1} parent=27 // pred_check
          %p167 = pneg %p55
        $region30: #{set_block_wrapper_forward.1} parent=27 // pred_check_branch
          %169 = sbr.rel (%p167) target = $region32
        $region31: #{set_block_wrapper_forward.1} parent=27 // pred_region
          %170 = dma.done %s163, 1024
        $region32: #{set_block_wrapper_forward.1} parent=27 // pred_fallthru
          _
        // Predicated region
        $region33: #{set_block_wrapper_forward.1} parent=27 // pred_check
          %p171 = pneg %p76
        $region34: #{set_block_wrapper_forward.1} parent=27 // pred_check_branch
          %173 = sbr.rel (%p171) target = $region36
        $region35: #{set_block_wrapper_forward.1} parent=27 // pred_region
          %174 = dma.done [#allocation7], 128
        $region36: #{set_block_wrapper_forward.1} parent=27 // pred_fallthru
          _
        %s175 = sand.u32 %s42, 1
        %s176 = scalar_lea.sflag [#allocation4], %s175
        %s177 = sand.u32 %s42, 1
        %s178 = smul.addr %s177, 64
        %s179 = scalar_lea.vmem [#allocation3], %s178
        %p180 = pneg %p55
        %p181 = pneg %p52
        %p182 = pneg %p76
        %p183 = pneg %p73
        %p184 = pneg %p104
        %p185 = pneg %p101
        %s186 = sand.u32 %s91, 1
        %s187 = scalar_lea.sflag [#allocation5], %s186
        %s188 = sand.u32 %s91, 1
        %s189 = smul.addr %s188, 128
        %s190 = scalar_lea.vmem [#allocation8], %s189
        %s191 = smul.u32 16, %s25
        %s192 = smul.u32 16, %s25
        %v193 = vld [vmem:[%s166] sm:$0xff]
        %v194 = vld [vmem:[%s166 + $0x8] sm:$0xff]
        %v195 = vld [vmem:[%s166 + $0x10] sm:$0xff]
        %v196 = vld [vmem:[%s166 + $0x18] sm:$0xff]
        %v197 = vld [vmem:[%s166 + $0x20] sm:$0xff]
        %v198 = vld [vmem:[%s166 + $0x28] sm:$0xff]
        %v199 = vld [vmem:[%s166 + $0x30] sm:$0xff]
        %v200 = vld [vmem:[%s166 + $0x38] sm:$0xff]
        %v201 = vlaneseq
        %v202 = vand.u32 %v201, 127
        %v203 = vadd.s32 %v202, 128
        %v204 = vadd.s32 %v202, 256
        %v205 = vadd.s32 %v202, 384
        %v206 = vadd.s32 %v202, 512
        %v207 = vadd.s32 %v202, 640
        %v208 = vadd.s32 %v202, 768
        %v209 = vadd.s32 %v202, 896
        %v210 = vadd.s32 %v202, 1024
        %v211 = vadd.s32 %v202, 1152
        %v212 = vadd.s32 %v202, 1280
        %v213 = vadd.s32 %v202, 1408
        %v214 = vadd.s32 %v202, 1536
        %v215 = vadd.s32 %v202, 1664
        %v216 = vadd.s32 %v202, 1792
        %v217 = vadd.s32 %v202, 1920
        %v218 = vand.u32 %v202, 15
        %v219 = vand.u32 %v203, 15
        %v220 = vand.u32 %v204, 15
        %v221 = vand.u32 %v205, 15
        %v222 = vand.u32 %v206, 15
        %v223 = vand.u32 %v207, 15
        %v224 = vand.u32 %v208, 15
        %v225 = vand.u32 %v209, 15
        %v226 = vand.u32 %v210, 15
        %v227 = vand.u32 %v211, 15
        %v228 = vand.u32 %v212, 15
        %v229 = vand.u32 %v213, 15
        %v230 = vand.u32 %v214, 15
        %v231 = vand.u32 %v215, 15
        %v232 = vand.u32 %v216, 15
        %v233 = vand.u32 %v217, 15
        %v234 = vshra.s32 %v202, 4
        %v235 = vshra.s32 %v203, 4
        %v236 = vshra.s32 %v204, 4
        %v237 = vshra.s32 %v205, 4
        %v238 = vshra.s32 %v206, 4
        %v239 = vshra.s32 %v207, 4
        %v240 = vshra.s32 %v208, 4
        %v241 = vshra.s32 %v209, 4
        %v242 = vshra.s32 %v210, 4
        %v243 = vshra.s32 %v211, 4
        %v244 = vshra.s32 %v212, 4
        %v245 = vshra.s32 %v213, 4
        %v246 = vshra.s32 %v214, 4
        %v247 = vshra.s32 %v215, 4
        %v248 = vshra.s32 %v216, 4
        %v249 = vshra.s32 %v217, 4
        %v250 = vand.u32 %v234, 15
        %v251 = vand.u32 %v235, 15
        %v252 = vand.u32 %v236, 15
        %v253 = vand.u32 %v237, 15
        %v254 = vand.u32 %v238, 15
        %v255 = vand.u32 %v239, 15
        %v256 = vand.u32 %v240, 15
        %v257 = vand.u32 %v241, 15
        %v258 = vand.u32 %v242, 15
        %v259 = vand.u32 %v243, 15
        %v260 = vand.u32 %v244, 15
        %v261 = vand.u32 %v245, 15
        %v262 = vand.u32 %v246, 15
        %v263 = vand.u32 %v247, 15
        %v264 = vand.u32 %v248, 15
        %v265 = vand.u32 %v249, 15
        %vm266 = vcmp.ge.s32.totalorder %v250, 1
        %vm267 = vcmp.ge.s32.totalorder %v251, 1
        %vm268 = vcmp.ge.s32.totalorder %v252, 1
        %vm269 = vcmp.ge.s32.totalorder %v253, 1
        %vm270 = vcmp.ge.s32.totalorder %v254, 1
        %vm271 = vcmp.ge.s32.totalorder %v255, 1
        %vm272 = vcmp.ge.s32.totalorder %v256, 1
        %vm273 = vcmp.ge.s32.totalorder %v257, 1
        %vm274 = vcmp.ge.s32.totalorder %v258, 1
        %vm275 = vcmp.ge.s32.totalorder %v259, 1
        %vm276 = vcmp.ge.s32.totalorder %v260, 1
        %vm277 = vcmp.ge.s32.totalorder %v261, 1
        %vm278 = vcmp.ge.s32.totalorder %v262, 1
        %vm279 = vcmp.ge.s32.totalorder %v263, 1
        %vm280 = vcmp.ge.s32.totalorder %v264, 1
        %vm281 = vcmp.ge.s32.totalorder %v265, 1
        %vm282 = vcmp.le.s32.totalorder %v250, 14
        %vm283 = vcmp.le.s32.totalorder %v251, 14
        %vm284 = vcmp.le.s32.totalorder %v252, 14
        %vm285 = vcmp.le.s32.totalorder %v253, 14
        %vm286 = vcmp.le.s32.totalorder %v254, 14
        %vm287 = vcmp.le.s32.totalorder %v255, 14
        %vm288 = vcmp.le.s32.totalorder %v256, 14
        %vm289 = vcmp.le.s32.totalorder %v257, 14
        %vm290 = vcmp.le.s32.totalorder %v258, 14
        %vm291 = vcmp.le.s32.totalorder %v259, 14
        %vm292 = vcmp.le.s32.totalorder %v260, 14
        %vm293 = vcmp.le.s32.totalorder %v261, 14
        %vm294 = vcmp.le.s32.totalorder %v262, 14
        %vm295 = vcmp.le.s32.totalorder %v263, 14
        %vm296 = vcmp.le.s32.totalorder %v264, 14
        %vm297 = vcmp.le.s32.totalorder %v265, 14
        %vm298 = vcmp.ge.s32.totalorder %v218, 1
        %vm299 = vcmp.ge.s32.totalorder %v219, 1
        %vm300 = vcmp.ge.s32.totalorder %v220, 1
        %vm301 = vcmp.ge.s32.totalorder %v221, 1
        %vm302 = vcmp.ge.s32.totalorder %v222, 1
        %vm303 = vcmp.ge.s32.totalorder %v223, 1
        %vm304 = vcmp.ge.s32.totalorder %v224, 1
        %vm305 = vcmp.ge.s32.totalorder %v225, 1
        %vm306 = vcmp.ge.s32.totalorder %v226, 1
        %vm307 = vcmp.ge.s32.totalorder %v227, 1
        %vm308 = vcmp.ge.s32.totalorder %v228, 1
        %vm309 = vcmp.ge.s32.totalorder %v229, 1
        %vm310 = vcmp.ge.s32.totalorder %v230, 1
        %vm311 = vcmp.ge.s32.totalorder %v231, 1
        %vm312 = vcmp.ge.s32.totalorder %v232, 1
        %vm313 = vcmp.ge.s32.totalorder %v233, 1
        %vm314 = vcmp.le.s32.totalorder %v218, 14
        %vm315 = vcmp.le.s32.totalorder %v219, 14
        %vm316 = vcmp.le.s32.totalorder %v220, 14
        %vm317 = vcmp.le.s32.totalorder %v221, 14
        %vm318 = vcmp.le.s32.totalorder %v222, 14
        %vm319 = vcmp.le.s32.totalorder %v223, 14
        %vm320 = vcmp.le.s32.totalorder %v224, 14
        %vm321 = vcmp.le.s32.totalorder %v225, 14
        %vm322 = vcmp.le.s32.totalorder %v226, 14
        %vm323 = vcmp.le.s32.totalorder %v227, 14
        %vm324 = vcmp.le.s32.totalorder %v228, 14
        %vm325 = vcmp.le.s32.totalorder %v229, 14
        %vm326 = vcmp.le.s32.totalorder %v230, 14
        %vm327 = vcmp.le.s32.totalorder %v231, 14
        %vm328 = vcmp.le.s32.totalorder %v232, 14
        %vm329 = vcmp.le.s32.totalorder %v233, 14
        %v338 = vcombine.high %v193, %v193
        %v339 = vcombine.high %v194, %v194
        %v340 = vcombine.high %v195, %v195
        %v341 = vcombine.high %v196, %v196
        %v342 = vcombine.high %v197, %v197
        %v343 = vcombine.high %v198, %v198
        %v344 = vcombine.high %v199, %v199
        %v345 = vcombine.high %v200, %v200
        %354 = vrot.lane.b32.xlu0 %v193, 17
        %v355 = vpop.permute.xlu0 %354
        %356 = vrot.lane.b32.xlu0 %v338, 17
        %v357 = vpop.permute.xlu0 %356
        %358 = vrot.lane.b32.xlu0 %v194, 17
        %v359 = vpop.permute.xlu0 %358
        %360 = vrot.lane.b32.xlu0 %v339, 17
        %v361 = vpop.permute.xlu0 %360
        %362 = vrot.lane.b32.xlu0 %v195, 17
        %v363 = vpop.permute.xlu0 %362
        %364 = vrot.lane.b32.xlu0 %v340, 17
        %v365 = vpop.permute.xlu0 %364
        %366 = vrot.lane.b32.xlu0 %v196, 17
        %v367 = vpop.permute.xlu0 %366
        %368 = vrot.lane.b32.xlu0 %v341, 17
        %v369 = vpop.permute.xlu0 %368
        %370 = vrot.lane.b32.xlu0 %v197, 17
        %v371 = vpop.permute.xlu0 %370
        %372 = vrot.lane.b32.xlu0 %v342, 17
        %v373 = vpop.permute.xlu0 %372
        %374 = vrot.lane.b32.xlu0 %v198, 17
        %v375 = vpop.permute.xlu0 %374
        %376 = vrot.lane.b32.xlu0 %v343, 17
        %v377 = vpop.permute.xlu0 %376
        %378 = vrot.lane.b32.xlu0 %v199, 17
        %v379 = vpop.permute.xlu0 %378
        %380 = vrot.lane.b32.xlu0 %v344, 17
        %v381 = vpop.permute.xlu0 %380
        %382 = vrot.lane.b32.xlu0 %v200, 17
        %v383 = vpop.permute.xlu0 %382
        %384 = vrot.lane.b32.xlu0 %v345, 17
        %v385 = vpop.permute.xlu0 %384
        %vm386 = vcmp.lt.s32.totalorder %v202, 17
        %v387 = vsel %vm386, %v383, %v385
        %v388 = vsel %vm386, %v381, %v383
        %v389 = vsel %vm386, %v379, %v381
        %v390 = vsel %vm386, %v377, %v379
        %v391 = vsel %vm386, %v375, %v377
        %v392 = vsel %vm386, %v373, %v375
        %v393 = vsel %vm386, %v371, %v373
        %v394 = vsel %vm386, %v369, %v371
        %v395 = vsel %vm386, %v367, %v369
        %v396 = vsel %vm386, %v365, %v367
        %v397 = vsel %vm386, %v363, %v365
        %v398 = vsel %vm386, %v361, %v363
        %v399 = vsel %vm386, %v359, %v361
        %v400 = vsel %vm386, %v357, %v359
        %v401 = vsel %vm386, %v355, %v357
        %v402 = vsel %vm386, %v385, %v355
        %vm403 = vmand %vm266, %vm298
        %vm404 = vmand %vm267, %vm299
        %vm405 = vmand %vm268, %vm300
        %vm406 = vmand %vm269, %vm301
        %vm407 = vmand %vm270, %vm302
        %vm408 = vmand %vm271, %vm303
        %vm409 = vmand %vm272, %vm304
        %vm410 = vmand %vm273, %vm305
        %vm411 = vmand %vm274, %vm306
        %vm412 = vmand %vm275, %vm307
        %vm413 = vmand %vm276, %vm308
        %vm414 = vmand %vm277, %vm309
        %vm415 = vmand %vm278, %vm310
        %vm416 = vmand %vm279, %vm311
        %vm417 = vmand %vm280, %vm312
        %vm418 = vmand %vm281, %vm313
        %v419 = vsel %vm403, 1, 0
        %v420 = vsel %vm404, 1, 0
        %v421 = vsel %vm405, 1, 0
        %v422 = vsel %vm406, 1, 0
        %v423 = vsel %vm407, 1, 0
        %v424 = vsel %vm408, 1, 0
        %v425 = vsel %vm409, 1, 0
        %v426 = vsel %vm410, 1, 0
        %v427 = vsel %vm411, 1, 0
        %v428 = vsel %vm412, 1, 0
        %v429 = vsel %vm413, 1, 0
        %v430 = vsel %vm414, 1, 0
        %v431 = vsel %vm415, 1, 0
        %v432 = vsel %vm416, 1, 0
        %v433 = vsel %vm417, 1, 0
        %v434 = vsel %vm418, 1, 0
        %vm435 = vcmp.eq.s32.totalorder %v419, 1
        %vm436 = vcmp.eq.s32.totalorder %v420, 1
        %vm437 = vcmp.eq.s32.totalorder %v421, 1
        %vm438 = vcmp.eq.s32.totalorder %v422, 1
        %vm439 = vcmp.eq.s32.totalorder %v423, 1
        %vm440 = vcmp.eq.s32.totalorder %v424, 1
        %vm441 = vcmp.eq.s32.totalorder %v425, 1
        %vm442 = vcmp.eq.s32.totalorder %v426, 1
        %vm443 = vcmp.eq.s32.totalorder %v427, 1
        %vm444 = vcmp.eq.s32.totalorder %v428, 1
        %vm445 = vcmp.eq.s32.totalorder %v429, 1
        %vm446 = vcmp.eq.s32.totalorder %v430, 1
        %vm447 = vcmp.eq.s32.totalorder %v431, 1
        %vm448 = vcmp.eq.s32.totalorder %v432, 1
        %vm449 = vcmp.eq.s32.totalorder %v433, 1
        %vm450 = vcmp.eq.s32.totalorder %v434, 1
        %v451 = vsel %vm435, %v402, 0.0
        %v452 = vsel %vm436, %v401, 0.0
        %v453 = vsel %vm437, %v400, 0.0
        %v454 = vsel %vm438, %v399, 0.0
        %v455 = vsel %vm439, %v398, 0.0
        %v456 = vsel %vm440, %v397, 0.0
        %v457 = vsel %vm441, %v396, 0.0
        %v458 = vsel %vm442, %v395, 0.0
        %v459 = vsel %vm443, %v394, 0.0
        %v460 = vsel %vm444, %v393, 0.0
        %v461 = vsel %vm445, %v392, 0.0
        %v462 = vsel %vm446, %v391, 0.0
        %v463 = vsel %vm447, %v390, 0.0
        %v464 = vsel %vm448, %v389, 0.0
        %v465 = vsel %vm449, %v388, 0.0
        %v466 = vsel %vm450, %v387, 0.0
        %vm467 = vcmask 1043456
        %v468 = vsel %vm467, %v451, 0.0
        %v469 = vsel %vm467, %v452, 0.0
        %v470 = vsel %vm467, %v453, 0.0
        %v471 = vsel %vm467, %v454, 0.0
        %v472 = vsel %vm467, %v455, 0.0
        %v473 = vsel %vm467, %v456, 0.0
        %v474 = vsel %vm467, %v457, 0.0
        %v475 = vsel %vm467, %v458, 0.0
        %v476 = vsel %vm467, %v459, 0.0
        %v477 = vsel %vm467, %v460, 0.0
        %v478 = vsel %vm467, %v461, 0.0
        %v479 = vsel %vm467, %v462, 0.0
        %v480 = vsel %vm467, %v463, 0.0
        %v481 = vsel %vm467, %v464, 0.0
        %v482 = vsel %vm467, %v465, 0.0
        %v483 = vsel %vm467, %v466, 0.0
        %484 = vst [vmem:[#allocation2] sm:$0xff] %v468
        %485 = vst [vmem:[#allocation2 + $0x8] sm:$0xff] %v469
        %486 = vst [vmem:[#allocation2 + $0x10] sm:$0xff] %v470
        %487 = vst [vmem:[#allocation2 + $0x18] sm:$0xff] %v471
        %488 = vst [vmem:[#allocation2 + $0x20] sm:$0xff] %v472
        %489 = vst [vmem:[#allocation2 + $0x28] sm:$0xff] %v473
        %490 = vst [vmem:[#allocation2 + $0x30] sm:$0xff] %v474
        %491 = vst [vmem:[#allocation2 + $0x38] sm:$0xff] %v475
        %492 = vst [vmem:[#allocation2 + $0x40] sm:$0xff] %v476
        %493 = vst [vmem:[#allocation2 + $0x48] sm:$0xff] %v477
        %494 = vst [vmem:[#allocation2 + $0x50] sm:$0xff] %v478
        %495 = vst [vmem:[#allocation2 + $0x58] sm:$0xff] %v479
        %496 = vst [vmem:[#allocation2 + $0x60] sm:$0xff] %v480
        %497 = vst [vmem:[#allocation2 + $0x68] sm:$0xff] %v481
        %498 = vst [vmem:[#allocation2 + $0x70] sm:$0xff] %v482
        %499 = vst [vmem:[#allocation2 + $0x78] sm:$0xff] %v483
        %500 = vrot.lane.b32.xlu0 %v193, 16
        %v501 = vpop.permute.xlu0 %500
        %502 = vrot.lane.b32.xlu0 %v338, 16
        %v503 = vpop.permute.xlu0 %502
        %504 = vrot.lane.b32.xlu0 %v194, 16
        %v505 = vpop.permute.xlu0 %504
        %506 = vrot.lane.b32.xlu0 %v339, 16
        %v507 = vpop.permute.xlu0 %506
        %508 = vrot.lane.b32.xlu0 %v195, 16
        %v509 = vpop.permute.xlu0 %508
        %510 = vrot.lane.b32.xlu0 %v340, 16
        %v511 = vpop.permute.xlu0 %510
        %512 = vrot.lane.b32.xlu0 %v196, 16
        %v513 = vpop.permute.xlu0 %512
        %514 = vrot.lane.b32.xlu0 %v341, 16
        %v515 = vpop.permute.xlu0 %514
        %516 = vrot.lane.b32.xlu0 %v197, 16
        %v517 = vpop.permute.xlu0 %516
        %518 = vrot.lane.b32.xlu0 %v342, 16
        %v519 = vpop.permute.xlu0 %518
        %520 = vrot.lane.b32.xlu0 %v198, 16
        %v521 = vpop.permute.xlu0 %520
        %522 = vrot.lane.b32.xlu0 %v343, 16
        %v523 = vpop.permute.xlu0 %522
        %524 = vrot.lane.b32.xlu0 %v199, 16
        %v525 = vpop.permute.xlu0 %524
        %526 = vrot.lane.b32.xlu0 %v344, 16
        %v527 = vpop.permute.xlu0 %526
        %528 = vrot.lane.b32.xlu0 %v200, 16
        %v529 = vpop.permute.xlu0 %528
        %530 = vrot.lane.b32.xlu0 %v345, 16
        %v531 = vpop.permute.xlu0 %530
        %vm532 = vcmp.lt.s32.totalorder %v202, 16
        %v533 = vsel %vm532, %v529, %v531
        %v534 = vsel %vm532, %v527, %v529
        %v535 = vsel %vm532, %v525, %v527
        %v536 = vsel %vm532, %v523, %v525
        %v537 = vsel %vm532, %v521, %v523
        %v538 = vsel %vm532, %v519, %v521
        %v539 = vsel %vm532, %v517, %v519
        %v540 = vsel %vm532, %v515, %v517
        %v541 = vsel %vm532, %v513, %v515
        %v542 = vsel %vm532, %v511, %v513
        %v543 = vsel %vm532, %v509, %v511
        %v544 = vsel %vm532, %v507, %v509
        %v545 = vsel %vm532, %v505, %v507
        %v546 = vsel %vm532, %v503, %v505
        %v547 = vsel %vm532, %v501, %v503
        %v548 = vsel %vm532, %v531, %v501
        %v549 = vsel %vm266, 1, 0
        %v550 = vsel %vm267, 1, 0
        %v551 = vsel %vm268, 1, 0
        %v552 = vsel %vm269, 1, 0
        %v553 = vsel %vm270, 1, 0
        %v554 = vsel %vm271, 1, 0
        %v555 = vsel %vm272, 1, 0
        %v556 = vsel %vm273, 1, 0
        %v557 = vsel %vm274, 1, 0
        %v558 = vsel %vm275, 1, 0
        %v559 = vsel %vm276, 1, 0
        %v560 = vsel %vm277, 1, 0
        %v561 = vsel %vm278, 1, 0
        %v562 = vsel %vm279, 1, 0
        %v563 = vsel %vm280, 1, 0
        %v564 = vsel %vm281, 1, 0
        %vm565 = vcmp.eq.s32.totalorder %v549, 1
        %vm566 = vcmp.eq.s32.totalorder %v550, 1
        %vm567 = vcmp.eq.s32.totalorder %v551, 1
        %vm568 = vcmp.eq.s32.totalorder %v552, 1
        %vm569 = vcmp.eq.s32.totalorder %v553, 1
        %vm570 = vcmp.eq.s32.totalorder %v554, 1
        %vm571 = vcmp.eq.s32.totalorder %v555, 1
        %vm572 = vcmp.eq.s32.totalorder %v556, 1
        %vm573 = vcmp.eq.s32.totalorder %v557, 1
        %vm574 = vcmp.eq.s32.totalorder %v558, 1
        %vm575 = vcmp.eq.s32.totalorder %v559, 1
        %vm576 = vcmp.eq.s32.totalorder %v560, 1
        %vm577 = vcmp.eq.s32.totalorder %v561, 1
        %vm578 = vcmp.eq.s32.totalorder %v562, 1
        %vm579 = vcmp.eq.s32.totalorder %v563, 1
        %vm580 = vcmp.eq.s32.totalorder %v564, 1
        %v581 = vsel %vm565, %v548, 0.0
        %v582 = vsel %vm566, %v547, 0.0
        %v583 = vsel %vm567, %v546, 0.0
        %v584 = vsel %vm568, %v545, 0.0
        %v585 = vsel %vm569, %v544, 0.0
        %v586 = vsel %vm570, %v543, 0.0
        %v587 = vsel %vm571, %v542, 0.0
        %v588 = vsel %vm572, %v541, 0.0
        %v589 = vsel %vm573, %v540, 0.0
        %v590 = vsel %vm574, %v539, 0.0
        %v591 = vsel %vm575, %v538, 0.0
        %v592 = vsel %vm576, %v537, 0.0
        %v593 = vsel %vm577, %v536, 0.0
        %v594 = vsel %vm578, %v535, 0.0
        %v595 = vsel %vm579, %v534, 0.0
        %v596 = vsel %vm580, %v533, 0.0
        %v597 = vsel %vm467, %v581, 0.0
        %v598 = vsel %vm467, %v582, 0.0
        %v599 = vsel %vm467, %v583, 0.0
        %v600 = vsel %vm467, %v584, 0.0
        %v601 = vsel %vm467, %v585, 0.0
        %v602 = vsel %vm467, %v586, 0.0
        %v603 = vsel %vm467, %v587, 0.0
        %v604 = vsel %vm467, %v588, 0.0
        %v605 = vsel %vm467, %v589, 0.0
        %v606 = vsel %vm467, %v590, 0.0
        %v607 = vsel %vm467, %v591, 0.0
        %v608 = vsel %vm467, %v592, 0.0
        %v609 = vsel %vm467, %v593, 0.0
        %v610 = vsel %vm467, %v594, 0.0
        %v611 = vsel %vm467, %v595, 0.0
        %v612 = vsel %vm467, %v596, 0.0
        %613 = vst [vmem:[#allocation2 + $0x80] sm:$0xff] %v597
        %614 = vst [vmem:[#allocation2 + $0x88] sm:$0xff] %v598
        %615 = vst [vmem:[#allocation2 + $0x90] sm:$0xff] %v599
        %616 = vst [vmem:[#allocation2 + $0x98] sm:$0xff] %v600
        %617 = vst [vmem:[#allocation2 + $0xa0] sm:$0xff] %v601
        %618 = vst [vmem:[#allocation2 + $0xa8] sm:$0xff] %v602
        %619 = vst [vmem:[#allocation2 + $0xb0] sm:$0xff] %v603
        %620 = vst [vmem:[#allocation2 + $0xb8] sm:$0xff] %v604
        %621 = vst [vmem:[#allocation2 + $0xc0] sm:$0xff] %v605
        %622 = vst [vmem:[#allocation2 + $0xc8] sm:$0xff] %v606
        %623 = vst [vmem:[#allocation2 + $0xd0] sm:$0xff] %v607
        %624 = vst [vmem:[#allocation2 + $0xd8] sm:$0xff] %v608
        %625 = vst [vmem:[#allocation2 + $0xe0] sm:$0xff] %v609
        %626 = vst [vmem:[#allocation2 + $0xe8] sm:$0xff] %v610
        %627 = vst [vmem:[#allocation2 + $0xf0] sm:$0xff] %v611
        %628 = vst [vmem:[#allocation2 + $0xf8] sm:$0xff] %v612
        %629 = vrot.lane.b32.xlu0 %v193, 15
        %v630 = vpop.permute.xlu0 %629
        %631 = vrot.lane.b32.xlu0 %v338, 15
        %v632 = vpop.permute.xlu0 %631
        %633 = vrot.lane.b32.xlu0 %v194, 15
        %v634 = vpop.permute.xlu0 %633
        %635 = vrot.lane.b32.xlu0 %v339, 15
        %v636 = vpop.permute.xlu0 %635
        %637 = vrot.lane.b32.xlu0 %v195, 15
        %v638 = vpop.permute.xlu0 %637
        %639 = vrot.lane.b32.xlu0 %v340, 15
        %v640 = vpop.permute.xlu0 %639
        %641 = vrot.lane.b32.xlu0 %v196, 15
        %v642 = vpop.permute.xlu0 %641
        %643 = vrot.lane.b32.xlu0 %v341, 15
        %v644 = vpop.permute.xlu0 %643
        %645 = vrot.lane.b32.xlu0 %v197, 15
        %v646 = vpop.permute.xlu0 %645
        %647 = vrot.lane.b32.xlu0 %v342, 15
        %v648 = vpop.permute.xlu0 %647
        %649 = vrot.lane.b32.xlu0 %v198, 15
        %v650 = vpop.permute.xlu0 %649
        %651 = vrot.lane.b32.xlu0 %v343, 15
        %v652 = vpop.permute.xlu0 %651
        %653 = vrot.lane.b32.xlu0 %v199, 15
        %v654 = vpop.permute.xlu0 %653
        %655 = vrot.lane.b32.xlu0 %v344, 15
        %v656 = vpop.permute.xlu0 %655
        %657 = vrot.lane.b32.xlu0 %v200, 15
        %v658 = vpop.permute.xlu0 %657
        %659 = vrot.lane.b32.xlu0 %v345, 15
        %v660 = vpop.permute.xlu0 %659
        %vm661 = vcmp.lt.s32.totalorder %v202, 15
        %v662 = vsel %vm661, %v658, %v660
        %v663 = vsel %vm661, %v656, %v658
        %v664 = vsel %vm661, %v654, %v656
        %v665 = vsel %vm661, %v652, %v654
        %v666 = vsel %vm661, %v650, %v652
        %v667 = vsel %vm661, %v648, %v650
        %v668 = vsel %vm661, %v646, %v648
        %v669 = vsel %vm661, %v644, %v646
        %v670 = vsel %vm661, %v642, %v644
        %v671 = vsel %vm661, %v640, %v642
        %v672 = vsel %vm661, %v638, %v640
        %v673 = vsel %vm661, %v636, %v638
        %v674 = vsel %vm661, %v634, %v636
        %v675 = vsel %vm661, %v632, %v634
        %v676 = vsel %vm661, %v630, %v632
        %v677 = vsel %vm661, %v660, %v630
        %vm678 = vmand %vm266, %vm314
        %vm679 = vmand %vm267, %vm315
        %vm680 = vmand %vm268, %vm316
        %vm681 = vmand %vm269, %vm317
        %vm682 = vmand %vm270, %vm318
        %vm683 = vmand %vm271, %vm319
        %vm684 = vmand %vm272, %vm320
        %vm685 = vmand %vm273, %vm321
        %vm686 = vmand %vm274, %vm322
        %vm687 = vmand %vm275, %vm323
        %vm688 = vmand %vm276, %vm324
        %vm689 = vmand %vm277, %vm325
        %vm690 = vmand %vm278, %vm326
        %vm691 = vmand %vm279, %vm327
        %vm692 = vmand %vm280, %vm328
        %vm693 = vmand %vm281, %vm329
        %v694 = vsel %vm678, 1, 0
        %v695 = vsel %vm679, 1, 0
        %v696 = vsel %vm680, 1, 0
        %v697 = vsel %vm681, 1, 0
        %v698 = vsel %vm682, 1, 0
        %v699 = vsel %vm683, 1, 0
        %v700 = vsel %vm684, 1, 0
        %v701 = vsel %vm685, 1, 0
        %v702 = vsel %vm686, 1, 0
        %v703 = vsel %vm687, 1, 0
        %v704 = vsel %vm688, 1, 0
        %v705 = vsel %vm689, 1, 0
        %v706 = vsel %vm690, 1, 0
        %v707 = vsel %vm691, 1, 0
        %v708 = vsel %vm692, 1, 0
        %v709 = vsel %vm693, 1, 0
        %vm710 = vcmp.eq.s32.totalorder %v694, 1
        %vm711 = vcmp.eq.s32.totalorder %v695, 1
        %vm712 = vcmp.eq.s32.totalorder %v696, 1
        %vm713 = vcmp.eq.s32.totalorder %v697, 1
        %vm714 = vcmp.eq.s32.totalorder %v698, 1
        %vm715 = vcmp.eq.s32.totalorder %v699, 1
        %vm716 = vcmp.eq.s32.totalorder %v700, 1
        %vm717 = vcmp.eq.s32.totalorder %v701, 1
        %vm718 = vcmp.eq.s32.totalorder %v702, 1
        %vm719 = vcmp.eq.s32.totalorder %v703, 1
        %vm720 = vcmp.eq.s32.totalorder %v704, 1
        %vm721 = vcmp.eq.s32.totalorder %v705, 1
        %vm722 = vcmp.eq.s32.totalorder %v706, 1
        %vm723 = vcmp.eq.s32.totalorder %v707, 1
        %vm724 = vcmp.eq.s32.totalorder %v708, 1
        %vm725 = vcmp.eq.s32.totalorder %v709, 1
        %v726 = vsel %vm710, %v677, 0.0
        %v727 = vsel %vm711, %v676, 0.0
        %v728 = vsel %vm712, %v675, 0.0
        %v729 = vsel %vm713, %v674, 0.0
        %v730 = vsel %vm714, %v673, 0.0
        %v731 = vsel %vm715, %v672, 0.0
        %v732 = vsel %vm716, %v671, 0.0
        %v733 = vsel %vm717, %v670, 0.0
        %v734 = vsel %vm718, %v669, 0.0
        %v735 = vsel %vm719, %v668, 0.0
        %v736 = vsel %vm720, %v667, 0.0
        %v737 = vsel %vm721, %v666, 0.0
        %v738 = vsel %vm722, %v665, 0.0
        %v739 = vsel %vm723, %v664, 0.0
        %v740 = vsel %vm724, %v663, 0.0
        %v741 = vsel %vm725, %v662, 0.0
        %v742 = vsel %vm467, %v726, 0.0
        %v743 = vsel %vm467, %v727, 0.0
        %v744 = vsel %vm467, %v728, 0.0
        %v745 = vsel %vm467, %v729, 0.0
        %v746 = vsel %vm467, %v730, 0.0
        %v747 = vsel %vm467, %v731, 0.0
        %v748 = vsel %vm467, %v732, 0.0
        %v749 = vsel %vm467, %v733, 0.0
        %v750 = vsel %vm467, %v734, 0.0
        %v751 = vsel %vm467, %v735, 0.0
        %v752 = vsel %vm467, %v736, 0.0
        %v753 = vsel %vm467, %v737, 0.0
        %v754 = vsel %vm467, %v738, 0.0
        %v755 = vsel %vm467, %v739, 0.0
        %v756 = vsel %vm467, %v740, 0.0
        %v757 = vsel %vm467, %v741, 0.0
        %758 = vst [vmem:[#allocation2 + $0x100] sm:$0xff] %v742
        %759 = vst [vmem:[#allocation2 + $0x108] sm:$0xff] %v743
        %760 = vst [vmem:[#allocation2 + $0x110] sm:$0xff] %v744
        %761 = vst [vmem:[#allocation2 + $0x118] sm:$0xff] %v745
        %762 = vst [vmem:[#allocation2 + $0x120] sm:$0xff] %v746
        %763 = vst [vmem:[#allocation2 + $0x128] sm:$0xff] %v747
        %764 = vst [vmem:[#allocation2 + $0x130] sm:$0xff] %v748
        %765 = vst [vmem:[#allocation2 + $0x138] sm:$0xff] %v749
        %766 = vst [vmem:[#allocation2 + $0x140] sm:$0xff] %v750
        %767 = vst [vmem:[#allocation2 + $0x148] sm:$0xff] %v751
        %768 = vst [vmem:[#allocation2 + $0x150] sm:$0xff] %v752
        %769 = vst [vmem:[#allocation2 + $0x158] sm:$0xff] %v753
        %770 = vst [vmem:[#allocation2 + $0x160] sm:$0xff] %v754
        %771 = vst [vmem:[#allocation2 + $0x168] sm:$0xff] %v755
        %772 = vst [vmem:[#allocation2 + $0x170] sm:$0xff] %v756
        %773 = vst [vmem:[#allocation2 + $0x178] sm:$0xff] %v757
        %774 = vrot.lane.b32.xlu0 %v193, 1
        %v775 = vpop.permute.xlu0 %774
        %776 = vrot.lane.b32.xlu0 %v338, 1
        %v777 = vpop.permute.xlu0 %776
        %778 = vrot.lane.b32.xlu0 %v194, 1
        %v779 = vpop.permute.xlu0 %778
        %780 = vrot.lane.b32.xlu0 %v339, 1
        %v781 = vpop.permute.xlu0 %780
        %782 = vrot.lane.b32.xlu0 %v195, 1
        %v783 = vpop.permute.xlu0 %782
        %784 = vrot.lane.b32.xlu0 %v340, 1
        %v785 = vpop.permute.xlu0 %784
        %786 = vrot.lane.b32.xlu0 %v196, 1
        %v787 = vpop.permute.xlu0 %786
        %788 = vrot.lane.b32.xlu0 %v341, 1
        %v789 = vpop.permute.xlu0 %788
        %790 = vrot.lane.b32.xlu0 %v197, 1
        %v791 = vpop.permute.xlu0 %790
        %792 = vrot.lane.b32.xlu0 %v342, 1
        %v793 = vpop.permute.xlu0 %792
        %794 = vrot.lane.b32.xlu0 %v198, 1
        %v795 = vpop.permute.xlu0 %794
        %796 = vrot.lane.b32.xlu0 %v343, 1
        %v797 = vpop.permute.xlu0 %796
        %798 = vrot.lane.b32.xlu0 %v199, 1
        %v799 = vpop.permute.xlu0 %798
        %800 = vrot.lane.b32.xlu0 %v344, 1
        %v801 = vpop.permute.xlu0 %800
        %802 = vrot.lane.b32.xlu0 %v200, 1
        %v803 = vpop.permute.xlu0 %802
        %804 = vrot.lane.b32.xlu0 %v345, 1
        %v805 = vpop.permute.xlu0 %804
        %vm806 = vcmp.lt.s32.totalorder %v202, 1
        %v807 = vsel %vm806, %v803, %v805
        %v808 = vsel %vm806, %v801, %v803
        %v809 = vsel %vm806, %v799, %v801
        %v810 = vsel %vm806, %v797, %v799
        %v811 = vsel %vm806, %v795, %v797
        %v812 = vsel %vm806, %v793, %v795
        %v813 = vsel %vm806, %v791, %v793
        %v814 = vsel %vm806, %v789, %v791
        %v815 = vsel %vm806, %v787, %v789
        %v816 = vsel %vm806, %v785, %v787
        %v817 = vsel %vm806, %v783, %v785
        %v818 = vsel %vm806, %v781, %v783
        %v819 = vsel %vm806, %v779, %v781
        %v820 = vsel %vm806, %v777, %v779
        %v821 = vsel %vm806, %v775, %v777
        %v822 = vsel %vm806, %v805, %v775
        %v823 = vsel %vm298, 1, 0
        %v824 = vsel %vm299, 1, 0
        %v825 = vsel %vm300, 1, 0
        %v826 = vsel %vm301, 1, 0
        %v827 = vsel %vm302, 1, 0
        %v828 = vsel %vm303, 1, 0
        %v829 = vsel %vm304, 1, 0
        %v830 = vsel %vm305, 1, 0
        %v831 = vsel %vm306, 1, 0
        %v832 = vsel %vm307, 1, 0
        %v833 = vsel %vm308, 1, 0
        %v834 = vsel %vm309, 1, 0
        %v835 = vsel %vm310, 1, 0
        %v836 = vsel %vm311, 1, 0
        %v837 = vsel %vm312, 1, 0
        %v838 = vsel %vm313, 1, 0
        %vm839 = vcmp.eq.s32.totalorder %v823, 1
        %vm840 = vcmp.eq.s32.totalorder %v824, 1
        %vm841 = vcmp.eq.s32.totalorder %v825, 1
        %vm842 = vcmp.eq.s32.totalorder %v826, 1
        %vm843 = vcmp.eq.s32.totalorder %v827, 1
        %vm844 = vcmp.eq.s32.totalorder %v828, 1
        %vm845 = vcmp.eq.s32.totalorder %v829, 1
        %vm846 = vcmp.eq.s32.totalorder %v830, 1
        %vm847 = vcmp.eq.s32.totalorder %v831, 1
        %vm848 = vcmp.eq.s32.totalorder %v832, 1
        %vm849 = vcmp.eq.s32.totalorder %v833, 1
        %vm850 = vcmp.eq.s32.totalorder %v834, 1
        %vm851 = vcmp.eq.s32.totalorder %v835, 1
        %vm852 = vcmp.eq.s32.totalorder %v836, 1
        %vm853 = vcmp.eq.s32.totalorder %v837, 1
        %vm854 = vcmp.eq.s32.totalorder %v838, 1
        %v855 = vsel %vm839, %v822, 0.0
        %v856 = vsel %vm840, %v821, 0.0
        %v857 = vsel %vm841, %v820, 0.0
        %v858 = vsel %vm842, %v819, 0.0
        %v859 = vsel %vm843, %v818, 0.0
        %v860 = vsel %vm844, %v817, 0.0
        %v861 = vsel %vm845, %v816, 0.0
        %v862 = vsel %vm846, %v815, 0.0
        %v863 = vsel %vm847, %v814, 0.0
        %v864 = vsel %vm848, %v813, 0.0
        %v865 = vsel %vm849, %v812, 0.0
        %v866 = vsel %vm850, %v811, 0.0
        %v867 = vsel %vm851, %v810, 0.0
        %v868 = vsel %vm852, %v809, 0.0
        %v869 = vsel %vm853, %v808, 0.0
        %v870 = vsel %vm854, %v807, 0.0
        %v871 = vsel %vm467, %v855, 0.0
        %v872 = vsel %vm467, %v856, 0.0
        %v873 = vsel %vm467, %v857, 0.0
        %v874 = vsel %vm467, %v858, 0.0
        %v875 = vsel %vm467, %v859, 0.0
        %v876 = vsel %vm467, %v860, 0.0
        %v877 = vsel %vm467, %v861, 0.0
        %v878 = vsel %vm467, %v862, 0.0
        %v879 = vsel %vm467, %v863, 0.0
        %v880 = vsel %vm467, %v864, 0.0
        %v881 = vsel %vm467, %v865, 0.0
        %v882 = vsel %vm467, %v866, 0.0
        %v883 = vsel %vm467, %v867, 0.0
        %v884 = vsel %vm467, %v868, 0.0
        %v885 = vsel %vm467, %v869, 0.0
        %v886 = vsel %vm467, %v870, 0.0
        %887 = vst [vmem:[#allocation2 + $0x180] sm:$0xff] %v871
        %888 = vst [vmem:[#allocation2 + $0x188] sm:$0xff] %v872
        %889 = vst [vmem:[#allocation2 + $0x190] sm:$0xff] %v873
        %890 = vst [vmem:[#allocation2 + $0x198] sm:$0xff] %v874
        %891 = vst [vmem:[#allocation2 + $0x1a0] sm:$0xff] %v875
        %892 = vst [vmem:[#allocation2 + $0x1a8] sm:$0xff] %v876
        %893 = vst [vmem:[#allocation2 + $0x1b0] sm:$0xff] %v877
        %894 = vst [vmem:[#allocation2 + $0x1b8] sm:$0xff] %v878
        %895 = vst [vmem:[#allocation2 + $0x1c0] sm:$0xff] %v879
        %896 = vst [vmem:[#allocation2 + $0x1c8] sm:$0xff] %v880
        %897 = vst [vmem:[#allocation2 + $0x1d0] sm:$0xff] %v881
        %898 = vst [vmem:[#allocation2 + $0x1d8] sm:$0xff] %v882
        %899 = vst [vmem:[#allocation2 + $0x1e0] sm:$0xff] %v883
        %900 = vst [vmem:[#allocation2 + $0x1e8] sm:$0xff] %v884
        %901 = vst [vmem:[#allocation2 + $0x1f0] sm:$0xff] %v885
        %902 = vst [vmem:[#allocation2 + $0x1f8] sm:$0xff] %v886
        %v903 = vsel %vm467, %v193, 0.0
        %v904 = vsel %vm467, %v338, 0.0
        %v905 = vsel %vm467, %v194, 0.0
        %v906 = vsel %vm467, %v339, 0.0
        %v907 = vsel %vm467, %v195, 0.0
        %v908 = vsel %vm467, %v340, 0.0
        %v909 = vsel %vm467, %v196, 0.0
        %v910 = vsel %vm467, %v341, 0.0
        %v911 = vsel %vm467, %v197, 0.0
        %v912 = vsel %vm467, %v342, 0.0
        %v913 = vsel %vm467, %v198, 0.0
        %v914 = vsel %vm467, %v343, 0.0
        %v915 = vsel %vm467, %v199, 0.0
        %v916 = vsel %vm467, %v344, 0.0
        %v917 = vsel %vm467, %v200, 0.0
        %v918 = vsel %vm467, %v345, 0.0
        %919 = vst [vmem:[#allocation2 + $0x200] sm:$0xff] %v903
        %920 = vst [vmem:[#allocation2 + $0x208] sm:$0xff] %v904
        %921 = vst [vmem:[#allocation2 + $0x210] sm:$0xff] %v905
        %922 = vst [vmem:[#allocation2 + $0x218] sm:$0xff] %v906
        %923 = vst [vmem:[#allocation2 + $0x220] sm:$0xff] %v907
        %924 = vst [vmem:[#allocation2 + $0x228] sm:$0xff] %v908
        %925 = vst [vmem:[#allocation2 + $0x230] sm:$0xff] %v909
        %926 = vst [vmem:[#allocation2 + $0x238] sm:$0xff] %v910
        %927 = vst [vmem:[#allocation2 + $0x240] sm:$0xff] %v911
        %928 = vst [vmem:[#allocation2 + $0x248] sm:$0xff] %v912
        %929 = vst [vmem:[#allocation2 + $0x250] sm:$0xff] %v913
        %930 = vst [vmem:[#allocation2 + $0x258] sm:$0xff] %v914
        %931 = vst [vmem:[#allocation2 + $0x260] sm:$0xff] %v915
        %932 = vst [vmem:[#allocation2 + $0x268] sm:$0xff] %v916
        %933 = vst [vmem:[#allocation2 + $0x270] sm:$0xff] %v917
        %934 = vst [vmem:[#allocation2 + $0x278] sm:$0xff] %v918
        %935 = vrot.lane.b32.xlu0 %v193, 127
        %v936 = vpop.permute.xlu0 %935
        %937 = vrot.lane.b32.xlu0 %v338, 127
        %v938 = vpop.permute.xlu0 %937
        %939 = vrot.lane.b32.xlu0 %v194, 127
        %v940 = vpop.permute.xlu0 %939
        %941 = vrot.lane.b32.xlu0 %v339, 127
        %v942 = vpop.permute.xlu0 %941
        %943 = vrot.lane.b32.xlu0 %v195, 127
        %v944 = vpop.permute.xlu0 %943
        %945 = vrot.lane.b32.xlu0 %v340, 127
        %v946 = vpop.permute.xlu0 %945
        %947 = vrot.lane.b32.xlu0 %v196, 127
        %v948 = vpop.permute.xlu0 %947
        %949 = vrot.lane.b32.xlu0 %v341, 127
        %v950 = vpop.permute.xlu0 %949
        %951 = vrot.lane.b32.xlu0 %v197, 127
        %v952 = vpop.permute.xlu0 %951
        %953 = vrot.lane.b32.xlu0 %v342, 127
        %v954 = vpop.permute.xlu0 %953
        %955 = vrot.lane.b32.xlu0 %v198, 127
        %v956 = vpop.permute.xlu0 %955
        %957 = vrot.lane.b32.xlu0 %v343, 127
        %v958 = vpop.permute.xlu0 %957
        %959 = vrot.lane.b32.xlu0 %v199, 127
        %v960 = vpop.permute.xlu0 %959
        %961 = vrot.lane.b32.xlu0 %v344, 127
        %v962 = vpop.permute.xlu0 %961
        %963 = vrot.lane.b32.xlu0 %v200, 127
        %v964 = vpop.permute.xlu0 %963
        %965 = vrot.lane.b32.xlu0 %v345, 127
        %v966 = vpop.permute.xlu0 %965
        %vm967 = vcmp.lt.s32.totalorder %v202, 127
        %v968 = vsel %vm967, %v964, %v966
        %v969 = vsel %vm967, %v962, %v964
        %v970 = vsel %vm967, %v960, %v962
        %v971 = vsel %vm967, %v958, %v960
        %v972 = vsel %vm967, %v956, %v958
        %v973 = vsel %vm967, %v954, %v956
        %v974 = vsel %vm967, %v952, %v954
        %v975 = vsel %vm967, %v950, %v952
        %v976 = vsel %vm967, %v948, %v950
        %v977 = vsel %vm967, %v946, %v948
        %v978 = vsel %vm967, %v944, %v946
        %v979 = vsel %vm967, %v942, %v944
        %v980 = vsel %vm967, %v940, %v942
        %v981 = vsel %vm967, %v938, %v940
        %v982 = vsel %vm967, %v936, %v938
        %v983 = vsel %vm967, %v966, %v936
        %v984 = vsel %vm314, 1, 0
        %v985 = vsel %vm315, 1, 0
        %v986 = vsel %vm316, 1, 0
        %v987 = vsel %vm317, 1, 0
        %v988 = vsel %vm318, 1, 0
        %v989 = vsel %vm319, 1, 0
        %v990 = vsel %vm320, 1, 0
        %v991 = vsel %vm321, 1, 0
        %v992 = vsel %vm322, 1, 0
        %v993 = vsel %vm323, 1, 0
        %v994 = vsel %vm324, 1, 0
        %v995 = vsel %vm325, 1, 0
        %v996 = vsel %vm326, 1, 0
        %v997 = vsel %vm327, 1, 0
        %v998 = vsel %vm328, 1, 0
        %v999 = vsel %vm329, 1, 0
        %vm1000 = vcmp.eq.s32.totalorder %v984, 1
        %vm1001 = vcmp.eq.s32.totalorder %v985, 1
        %vm1002 = vcmp.eq.s32.totalorder %v986, 1
        %vm1003 = vcmp.eq.s32.totalorder %v987, 1
        %vm1004 = vcmp.eq.s32.totalorder %v988, 1
        %vm1005 = vcmp.eq.s32.totalorder %v989, 1
        %vm1006 = vcmp.eq.s32.totalorder %v990, 1
        %vm1007 = vcmp.eq.s32.totalorder %v991, 1
        %vm1008 = vcmp.eq.s32.totalorder %v992, 1
        %vm1009 = vcmp.eq.s32.totalorder %v993, 1
        %vm1010 = vcmp.eq.s32.totalorder %v994, 1
        %vm1011 = vcmp.eq.s32.totalorder %v995, 1
        %vm1012 = vcmp.eq.s32.totalorder %v996, 1
        %vm1013 = vcmp.eq.s32.totalorder %v997, 1
        %vm1014 = vcmp.eq.s32.totalorder %v998, 1
        %vm1015 = vcmp.eq.s32.totalorder %v999, 1
        %v1016 = vsel %vm1000, %v982, 0.0
        %v1017 = vsel %vm1001, %v981, 0.0
        %v1018 = vsel %vm1002, %v980, 0.0
        %v1019 = vsel %vm1003, %v979, 0.0
        %v1020 = vsel %vm1004, %v978, 0.0
        %v1021 = vsel %vm1005, %v977, 0.0
        %v1022 = vsel %vm1006, %v976, 0.0
        %v1023 = vsel %vm1007, %v975, 0.0
        %v1024 = vsel %vm1008, %v974, 0.0
        %v1025 = vsel %vm1009, %v973, 0.0
        %v1026 = vsel %vm1010, %v972, 0.0
        %v1027 = vsel %vm1011, %v971, 0.0
        %v1028 = vsel %vm1012, %v970, 0.0
        %v1029 = vsel %vm1013, %v969, 0.0
        %v1030 = vsel %vm1014, %v968, 0.0
        %v1031 = vsel %vm1015, %v983, 0.0
        %v1032 = vsel %vm467, %v1016, 0.0
        %v1033 = vsel %vm467, %v1017, 0.0
        %v1034 = vsel %vm467, %v1018, 0.0
        %v1035 = vsel %vm467, %v1019, 0.0
        %v1036 = vsel %vm467, %v1020, 0.0
        %v1037 = vsel %vm467, %v1021, 0.0
        %v1038 = vsel %vm467, %v1022, 0.0
        %v1039 = vsel %vm467, %v1023, 0.0
        %v1040 = vsel %vm467, %v1024, 0.0
        %v1041 = vsel %vm467, %v1025, 0.0
        %v1042 = vsel %vm467, %v1026, 0.0
        %v1043 = vsel %vm467, %v1027, 0.0
        %v1044 = vsel %vm467, %v1028, 0.0
        %v1045 = vsel %vm467, %v1029, 0.0
        %v1046 = vsel %vm467, %v1030, 0.0
        %v1047 = vsel %vm467, %v1031, 0.0
        %1048 = vst [vmem:[#allocation2 + $0x280] sm:$0xff] %v1032
        %1049 = vst [vmem:[#allocation2 + $0x288] sm:$0xff] %v1033
        %1050 = vst [vmem:[#allocation2 + $0x290] sm:$0xff] %v1034
        %1051 = vst [vmem:[#allocation2 + $0x298] sm:$0xff] %v1035
        %1052 = vst [vmem:[#allocation2 + $0x2a0] sm:$0xff] %v1036
        %1053 = vst [vmem:[#allocation2 + $0x2a8] sm:$0xff] %v1037
        %1054 = vst [vmem:[#allocation2 + $0x2b0] sm:$0xff] %v1038
        %1055 = vst [vmem:[#allocation2 + $0x2b8] sm:$0xff] %v1039
        %1056 = vst [vmem:[#allocation2 + $0x2c0] sm:$0xff] %v1040
        %1057 = vst [vmem:[#allocation2 + $0x2c8] sm:$0xff] %v1041
        %1058 = vst [vmem:[#allocation2 + $0x2d0] sm:$0xff] %v1042
        %1059 = vst [vmem:[#allocation2 + $0x2d8] sm:$0xff] %v1043
        %1060 = vst [vmem:[#allocation2 + $0x2e0] sm:$0xff] %v1044
        %1061 = vst [vmem:[#allocation2 + $0x2e8] sm:$0xff] %v1045
        %1062 = vst [vmem:[#allocation2 + $0x2f0] sm:$0xff] %v1046
        %1063 = vst [vmem:[#allocation2 + $0x2f8] sm:$0xff] %v1047
        %1064 = vrot.lane.b32.xlu0 %v193, 113
        %v1065 = vpop.permute.xlu0 %1064
        %1066 = vrot.lane.b32.xlu0 %v338, 113
        %v1067 = vpop.permute.xlu0 %1066
        %1068 = vrot.lane.b32.xlu0 %v194, 113
        %v1069 = vpop.permute.xlu0 %1068
        %1070 = vrot.lane.b32.xlu0 %v339, 113
        %v1071 = vpop.permute.xlu0 %1070
        %1072 = vrot.lane.b32.xlu0 %v195, 113
        %v1073 = vpop.permute.xlu0 %1072
        %1074 = vrot.lane.b32.xlu0 %v340, 113
        %v1075 = vpop.permute.xlu0 %1074
        %1076 = vrot.lane.b32.xlu0 %v196, 113
        %v1077 = vpop.permute.xlu0 %1076
        %1078 = vrot.lane.b32.xlu0 %v341, 113
        %v1079 = vpop.permute.xlu0 %1078
        %1080 = vrot.lane.b32.xlu0 %v197, 113
        %v1081 = vpop.permute.xlu0 %1080
        %1082 = vrot.lane.b32.xlu0 %v342, 113
        %v1083 = vpop.permute.xlu0 %1082
        %1084 = vrot.lane.b32.xlu0 %v198, 113
        %v1085 = vpop.permute.xlu0 %1084
        %1086 = vrot.lane.b32.xlu0 %v343, 113
        %v1087 = vpop.permute.xlu0 %1086
        %1088 = vrot.lane.b32.xlu0 %v199, 113
        %v1089 = vpop.permute.xlu0 %1088
        %1090 = vrot.lane.b32.xlu0 %v344, 113
        %v1091 = vpop.permute.xlu0 %1090
        %1092 = vrot.lane.b32.xlu0 %v200, 113
        %v1093 = vpop.permute.xlu0 %1092
        %1094 = vrot.lane.b32.xlu0 %v345, 113
        %v1095 = vpop.permute.xlu0 %1094
        %vm1096 = vcmp.lt.s32.totalorder %v202, 113
        %v1097 = vsel %vm1096, %v1093, %v1095
        %v1098 = vsel %vm1096, %v1091, %v1093
        %v1099 = vsel %vm1096, %v1089, %v1091
        %v1100 = vsel %vm1096, %v1087, %v1089
        %v1101 = vsel %vm1096, %v1085, %v1087
        %v1102 = vsel %vm1096, %v1083, %v1085
        %v1103 = vsel %vm1096, %v1081, %v1083
        %v1104 = vsel %vm1096, %v1079, %v1081
        %v1105 = vsel %vm1096, %v1077, %v1079
        %v1106 = vsel %vm1096, %v1075, %v1077
        %v1107 = vsel %vm1096, %v1073, %v1075
        %v1108 = vsel %vm1096, %v1071, %v1073
        %v1109 = vsel %vm1096, %v1069, %v1071
        %v1110 = vsel %vm1096, %v1067, %v1069
        %v1111 = vsel %vm1096, %v1065, %v1067
        %v1112 = vsel %vm1096, %v1095, %v1065
        %vm1113 = vmand %vm282, %vm298
        %vm1114 = vmand %vm283, %vm299
        %vm1115 = vmand %vm284, %vm300
        %vm1116 = vmand %vm285, %vm301
        %vm1117 = vmand %vm286, %vm302
        %vm1118 = vmand %vm287, %vm303
        %vm1119 = vmand %vm288, %vm304
        %vm1120 = vmand %vm289, %vm305
        %vm1121 = vmand %vm290, %vm306
        %vm1122 = vmand %vm291, %vm307
        %vm1123 = vmand %vm292, %vm308
        %vm1124 = vmand %vm293, %vm309
        %vm1125 = vmand %vm294, %vm310
        %vm1126 = vmand %vm295, %vm311
        %vm1127 = vmand %vm296, %vm312
        %vm1128 = vmand %vm297, %vm313
        %v1129 = vsel %vm1113, 1, 0
        %v1130 = vsel %vm1114, 1, 0
        %v1131 = vsel %vm1115, 1, 0
        %v1132 = vsel %vm1116, 1, 0
        %v1133 = vsel %vm1117, 1, 0
        %v1134 = vsel %vm1118, 1, 0
        %v1135 = vsel %vm1119, 1, 0
        %v1136 = vsel %vm1120, 1, 0
        %v1137 = vsel %vm1121, 1, 0
        %v1138 = vsel %vm1122, 1, 0
        %v1139 = vsel %vm1123, 1, 0
        %v1140 = vsel %vm1124, 1, 0
        %v1141 = vsel %vm1125, 1, 0
        %v1142 = vsel %vm1126, 1, 0
        %v1143 = vsel %vm1127, 1, 0
        %v1144 = vsel %vm1128, 1, 0
        %vm1145 = vcmp.eq.s32.totalorder %v1129, 1
        %vm1146 = vcmp.eq.s32.totalorder %v1130, 1
        %vm1147 = vcmp.eq.s32.totalorder %v1131, 1
        %vm1148 = vcmp.eq.s32.totalorder %v1132, 1
        %vm1149 = vcmp.eq.s32.totalorder %v1133, 1
        %vm1150 = vcmp.eq.s32.totalorder %v1134, 1
        %vm1151 = vcmp.eq.s32.totalorder %v1135, 1
        %vm1152 = vcmp.eq.s32.totalorder %v1136, 1
        %vm1153 = vcmp.eq.s32.totalorder %v1137, 1
        %vm1154 = vcmp.eq.s32.totalorder %v1138, 1
        %vm1155 = vcmp.eq.s32.totalorder %v1139, 1
        %vm1156 = vcmp.eq.s32.totalorder %v1140, 1
        %vm1157 = vcmp.eq.s32.totalorder %v1141, 1
        %vm1158 = vcmp.eq.s32.totalorder %v1142, 1
        %vm1159 = vcmp.eq.s32.totalorder %v1143, 1
        %vm1160 = vcmp.eq.s32.totalorder %v1144, 1
        %v1161 = vsel %vm1145, %v1111, 0.0
        %v1162 = vsel %vm1146, %v1110, 0.0
        %v1163 = vsel %vm1147, %v1109, 0.0
        %v1164 = vsel %vm1148, %v1108, 0.0
        %v1165 = vsel %vm1149, %v1107, 0.0
        %v1166 = vsel %vm1150, %v1106, 0.0
        %v1167 = vsel %vm1151, %v1105, 0.0
        %v1168 = vsel %vm1152, %v1104, 0.0
        %v1169 = vsel %vm1153, %v1103, 0.0
        %v1170 = vsel %vm1154, %v1102, 0.0
        %v1171 = vsel %vm1155, %v1101, 0.0
        %v1172 = vsel %vm1156, %v1100, 0.0
        %v1173 = vsel %vm1157, %v1099, 0.0
        %v1174 = vsel %vm1158, %v1098, 0.0
        %v1175 = vsel %vm1159, %v1097, 0.0
        %v1176 = vsel %vm1160, %v1112, 0.0
        %v1177 = vsel %vm467, %v1161, 0.0
        %v1178 = vsel %vm467, %v1162, 0.0
        %v1179 = vsel %vm467, %v1163, 0.0
        %v1180 = vsel %vm467, %v1164, 0.0
        %v1181 = vsel %vm467, %v1165, 0.0
        %v1182 = vsel %vm467, %v1166, 0.0
        %v1183 = vsel %vm467, %v1167, 0.0
        %v1184 = vsel %vm467, %v1168, 0.0
        %v1185 = vsel %vm467, %v1169, 0.0
        %v1186 = vsel %vm467, %v1170, 0.0
        %v1187 = vsel %vm467, %v1171, 0.0
        %v1188 = vsel %vm467, %v1172, 0.0
        %v1189 = vsel %vm467, %v1173, 0.0
        %v1190 = vsel %vm467, %v1174, 0.0
        %v1191 = vsel %vm467, %v1175, 0.0
        %v1192 = vsel %vm467, %v1176, 0.0
        %1193 = vst [vmem:[#allocation2 + $0x300] sm:$0xff] %v1177
        %1194 = vst [vmem:[#allocation2 + $0x308] sm:$0xff] %v1178
        %1195 = vst [vmem:[#allocation2 + $0x310] sm:$0xff] %v1179
        %1196 = vst [vmem:[#allocation2 + $0x318] sm:$0xff] %v1180
        %1197 = vst [vmem:[#allocation2 + $0x320] sm:$0xff] %v1181
        %1198 = vst [vmem:[#allocation2 + $0x328] sm:$0xff] %v1182
        %1199 = vst [vmem:[#allocation2 + $0x330] sm:$0xff] %v1183
        %1200 = vst [vmem:[#allocation2 + $0x338] sm:$0xff] %v1184
        %1201 = vst [vmem:[#allocation2 + $0x340] sm:$0xff] %v1185
        %1202 = vst [vmem:[#allocation2 + $0x348] sm:$0xff] %v1186
        %1203 = vst [vmem:[#allocation2 + $0x350] sm:$0xff] %v1187
        %1204 = vst [vmem:[#allocation2 + $0x358] sm:$0xff] %v1188
        %1205 = vst [vmem:[#allocation2 + $0x360] sm:$0xff] %v1189
        %1206 = vst [vmem:[#allocation2 + $0x368] sm:$0xff] %v1190
        %1207 = vst [vmem:[#allocation2 + $0x370] sm:$0xff] %v1191
        %1208 = vst [vmem:[#allocation2 + $0x378] sm:$0xff] %v1192
        %1209 = vrot.lane.b32.xlu0 %v193, 112
        %v1210 = vpop.permute.xlu0 %1209
        %1211 = vrot.lane.b32.xlu0 %v338, 112
        %v1212 = vpop.permute.xlu0 %1211
        %1213 = vrot.lane.b32.xlu0 %v194, 112
        %v1214 = vpop.permute.xlu0 %1213
        %1215 = vrot.lane.b32.xlu0 %v339, 112
        %v1216 = vpop.permute.xlu0 %1215
        %1217 = vrot.lane.b32.xlu0 %v195, 112
        %v1218 = vpop.permute.xlu0 %1217
        %1219 = vrot.lane.b32.xlu0 %v340, 112
        %v1220 = vpop.permute.xlu0 %1219
        %1221 = vrot.lane.b32.xlu0 %v196, 112
        %v1222 = vpop.permute.xlu0 %1221
        %1223 = vrot.lane.b32.xlu0 %v341, 112
        %v1224 = vpop.permute.xlu0 %1223
        %1225 = vrot.lane.b32.xlu0 %v197, 112
        %v1226 = vpop.permute.xlu0 %1225
        %1227 = vrot.lane.b32.xlu0 %v342, 112
        %v1228 = vpop.permute.xlu0 %1227
        %1229 = vrot.lane.b32.xlu0 %v198, 112
        %v1230 = vpop.permute.xlu0 %1229
        %1231 = vrot.lane.b32.xlu0 %v343, 112
        %v1232 = vpop.permute.xlu0 %1231
        %1233 = vrot.lane.b32.xlu0 %v199, 112
        %v1234 = vpop.permute.xlu0 %1233
        %1235 = vrot.lane.b32.xlu0 %v344, 112
        %v1236 = vpop.permute.xlu0 %1235
        %1237 = vrot.lane.b32.xlu0 %v200, 112
        %v1238 = vpop.permute.xlu0 %1237
        %1239 = vrot.lane.b32.xlu0 %v345, 112
        %v1240 = vpop.permute.xlu0 %1239
        %vm1241 = vcmp.lt.s32.totalorder %v202, 112
        %v1242 = vsel %vm1241, %v1238, %v1240
        %v1243 = vsel %vm1241, %v1236, %v1238
        %v1244 = vsel %vm1241, %v1234, %v1236
        %v1245 = vsel %vm1241, %v1232, %v1234
        %v1246 = vsel %vm1241, %v1230, %v1232
        %v1247 = vsel %vm1241, %v1228, %v1230
        %v1248 = vsel %vm1241, %v1226, %v1228
        %v1249 = vsel %vm1241, %v1224, %v1226
        %v1250 = vsel %vm1241, %v1222, %v1224
        %v1251 = vsel %vm1241, %v1220, %v1222
        %v1252 = vsel %vm1241, %v1218, %v1220
        %v1253 = vsel %vm1241, %v1216, %v1218
        %v1254 = vsel %vm1241, %v1214, %v1216
        %v1255 = vsel %vm1241, %v1212, %v1214
        %v1256 = vsel %vm1241, %v1210, %v1212
        %v1257 = vsel %vm1241, %v1240, %v1210
        %v1258 = vsel %vm282, 1, 0
        %v1259 = vsel %vm283, 1, 0
        %v1260 = vsel %vm284, 1, 0
        %v1261 = vsel %vm285, 1, 0
        %v1262 = vsel %vm286, 1, 0
        %v1263 = vsel %vm287, 1, 0
        %v1264 = vsel %vm288, 1, 0
        %v1265 = vsel %vm289, 1, 0
        %v1266 = vsel %vm290, 1, 0
        %v1267 = vsel %vm291, 1, 0
        %v1268 = vsel %vm292, 1, 0
        %v1269 = vsel %vm293, 1, 0
        %v1270 = vsel %vm294, 1, 0
        %v1271 = vsel %vm295, 1, 0
        %v1272 = vsel %vm296, 1, 0
        %v1273 = vsel %vm297, 1, 0
        %vm1274 = vcmp.eq.s32.totalorder %v1258, 1
        %vm1275 = vcmp.eq.s32.totalorder %v1259, 1
        %vm1276 = vcmp.eq.s32.totalorder %v1260, 1
        %vm1277 = vcmp.eq.s32.totalorder %v1261, 1
        %vm1278 = vcmp.eq.s32.totalorder %v1262, 1
        %vm1279 = vcmp.eq.s32.totalorder %v1263, 1
        %vm1280 = vcmp.eq.s32.totalorder %v1264, 1
        %vm1281 = vcmp.eq.s32.totalorder %v1265, 1
        %vm1282 = vcmp.eq.s32.totalorder %v1266, 1
        %vm1283 = vcmp.eq.s32.totalorder %v1267, 1
        %vm1284 = vcmp.eq.s32.totalorder %v1268, 1
        %vm1285 = vcmp.eq.s32.totalorder %v1269, 1
        %vm1286 = vcmp.eq.s32.totalorder %v1270, 1
        %vm1287 = vcmp.eq.s32.totalorder %v1271, 1
        %vm1288 = vcmp.eq.s32.totalorder %v1272, 1
        %vm1289 = vcmp.eq.s32.totalorder %v1273, 1
        %v1290 = vsel %vm1274, %v1256, 0.0
        %v1291 = vsel %vm1275, %v1255, 0.0
        %v1292 = vsel %vm1276, %v1254, 0.0
        %v1293 = vsel %vm1277, %v1253, 0.0
        %v1294 = vsel %vm1278, %v1252, 0.0
        %v1295 = vsel %vm1279, %v1251, 0.0
        %v1296 = vsel %vm1280, %v1250, 0.0
        %v1297 = vsel %vm1281, %v1249, 0.0
        %v1298 = vsel %vm1282, %v1248, 0.0
        %v1299 = vsel %vm1283, %v1247, 0.0
        %v1300 = vsel %vm1284, %v1246, 0.0
        %v1301 = vsel %vm1285, %v1245, 0.0
        %v1302 = vsel %vm1286, %v1244, 0.0
        %v1303 = vsel %vm1287, %v1243, 0.0
        %v1304 = vsel %vm1288, %v1242, 0.0
        %v1305 = vsel %vm1289, %v1257, 0.0
        %v1306 = vsel %vm467, %v1290, 0.0
        %v1307 = vsel %vm467, %v1291, 0.0
        %v1308 = vsel %vm467, %v1292, 0.0
        %v1309 = vsel %vm467, %v1293, 0.0
        %v1310 = vsel %vm467, %v1294, 0.0
        %v1311 = vsel %vm467, %v1295, 0.0
        %v1312 = vsel %vm467, %v1296, 0.0
        %v1313 = vsel %vm467, %v1297, 0.0
        %v1314 = vsel %vm467, %v1298, 0.0
        %v1315 = vsel %vm467, %v1299, 0.0
        %v1316 = vsel %vm467, %v1300, 0.0
        %v1317 = vsel %vm467, %v1301, 0.0
        %v1318 = vsel %vm467, %v1302, 0.0
        %v1319 = vsel %vm467, %v1303, 0.0
        %v1320 = vsel %vm467, %v1304, 0.0
        %v1321 = vsel %vm467, %v1305, 0.0
        %1322 = vst [vmem:[#allocation2 + $0x380] sm:$0xff] %v1306
        %1323 = vst [vmem:[#allocation2 + $0x388] sm:$0xff] %v1307
        %1324 = vst [vmem:[#allocation2 + $0x390] sm:$0xff] %v1308
        %1325 = vst [vmem:[#allocation2 + $0x398] sm:$0xff] %v1309
        %1326 = vst [vmem:[#allocation2 + $0x3a0] sm:$0xff] %v1310
        %1327 = vst [vmem:[#allocation2 + $0x3a8] sm:$0xff] %v1311
        %1328 = vst [vmem:[#allocation2 + $0x3b0] sm:$0xff] %v1312
        %1329 = vst [vmem:[#allocation2 + $0x3b8] sm:$0xff] %v1313
        %1330 = vst [vmem:[#allocation2 + $0x3c0] sm:$0xff] %v1314
        %1331 = vst [vmem:[#allocation2 + $0x3c8] sm:$0xff] %v1315
        %1332 = vst [vmem:[#allocation2 + $0x3d0] sm:$0xff] %v1316
        %1333 = vst [vmem:[#allocation2 + $0x3d8] sm:$0xff] %v1317
        %1334 = vst [vmem:[#allocation2 + $0x3e0] sm:$0xff] %v1318
        %1335 = vst [vmem:[#allocation2 + $0x3e8] sm:$0xff] %v1319
        %1336 = vst [vmem:[#allocation2 + $0x3f0] sm:$0xff] %v1320
        %1337 = vst [vmem:[#allocation2 + $0x3f8] sm:$0xff] %v1321
        %1338 = vrot.lane.b32.xlu0 %v193, 111
        %v1339 = vpop.permute.xlu0 %1338
        %1340 = vrot.lane.b32.xlu0 %v338, 111
        %v1341 = vpop.permute.xlu0 %1340
        %1342 = vrot.lane.b32.xlu0 %v194, 111
        %v1343 = vpop.permute.xlu0 %1342
        %1344 = vrot.lane.b32.xlu0 %v339, 111
        %v1345 = vpop.permute.xlu0 %1344
        %1346 = vrot.lane.b32.xlu0 %v195, 111
        %v1347 = vpop.permute.xlu0 %1346
        %1348 = vrot.lane.b32.xlu0 %v340, 111
        %v1349 = vpop.permute.xlu0 %1348
        %1350 = vrot.lane.b32.xlu0 %v196, 111
        %v1351 = vpop.permute.xlu0 %1350
        %1352 = vrot.lane.b32.xlu0 %v341, 111
        %v1353 = vpop.permute.xlu0 %1352
        %1354 = vrot.lane.b32.xlu0 %v197, 111
        %v1355 = vpop.permute.xlu0 %1354
        %1356 = vrot.lane.b32.xlu0 %v342, 111
        %v1357 = vpop.permute.xlu0 %1356
        %1358 = vrot.lane.b32.xlu0 %v198, 111
        %v1359 = vpop.permute.xlu0 %1358
        %1360 = vrot.lane.b32.xlu0 %v343, 111
        %v1361 = vpop.permute.xlu0 %1360
        %1362 = vrot.lane.b32.xlu0 %v199, 111
        %v1363 = vpop.permute.xlu0 %1362
        %1364 = vrot.lane.b32.xlu0 %v344, 111
        %v1365 = vpop.permute.xlu0 %1364
        %1366 = vrot.lane.b32.xlu0 %v200, 111
        %v1367 = vpop.permute.xlu0 %1366
        %1368 = vrot.lane.b32.xlu0 %v345, 111
        %v1369 = vpop.permute.xlu0 %1368
        %vm1370 = vcmp.lt.s32.totalorder %v202, 111
        %v1371 = vsel %vm1370, %v1367, %v1369
        %v1372 = vsel %vm1370, %v1365, %v1367
        %v1373 = vsel %vm1370, %v1363, %v1365
        %v1374 = vsel %vm1370, %v1361, %v1363
        %v1375 = vsel %vm1370, %v1359, %v1361
        %v1376 = vsel %vm1370, %v1357, %v1359
        %v1377 = vsel %vm1370, %v1355, %v1357
        %v1378 = vsel %vm1370, %v1353, %v1355
        %v1379 = vsel %vm1370, %v1351, %v1353
        %v1380 = vsel %vm1370, %v1349, %v1351
        %v1381 = vsel %vm1370, %v1347, %v1349
        %v1382 = vsel %vm1370, %v1345, %v1347
        %v1383 = vsel %vm1370, %v1343, %v1345
        %v1384 = vsel %vm1370, %v1341, %v1343
        %v1385 = vsel %vm1370, %v1339, %v1341
        %v1386 = vsel %vm1370, %v1369, %v1339
        %vm1387 = vmand %vm282, %vm314
        %vm1388 = vmand %vm283, %vm315
        %vm1389 = vmand %vm284, %vm316
        %vm1390 = vmand %vm285, %vm317
        %vm1391 = vmand %vm286, %vm318
        %vm1392 = vmand %vm287, %vm319
        %vm1393 = vmand %vm288, %vm320
        %vm1394 = vmand %vm289, %vm321
        %vm1395 = vmand %vm290, %vm322
        %vm1396 = vmand %vm291, %vm323
        %vm1397 = vmand %vm292, %vm324
        %vm1398 = vmand %vm293, %vm325
        %vm1399 = vmand %vm294, %vm326
        %vm1400 = vmand %vm295, %vm327
        %vm1401 = vmand %vm296, %vm328
        %vm1402 = vmand %vm297, %vm329
        %v1403 = vsel %vm1387, 1, 0
        %v1404 = vsel %vm1388, 1, 0
        %v1405 = vsel %vm1389, 1, 0
        %v1406 = vsel %vm1390, 1, 0
        %v1407 = vsel %vm1391, 1, 0
        %v1408 = vsel %vm1392, 1, 0
        %v1409 = vsel %vm1393, 1, 0
        %v1410 = vsel %vm1394, 1, 0
        %v1411 = vsel %vm1395, 1, 0
        %v1412 = vsel %vm1396, 1, 0
        %v1413 = vsel %vm1397, 1, 0
        %v1414 = vsel %vm1398, 1, 0
        %v1415 = vsel %vm1399, 1, 0
        %v1416 = vsel %vm1400, 1, 0
        %v1417 = vsel %vm1401, 1, 0
        %v1418 = vsel %vm1402, 1, 0
        %vm1419 = vcmp.eq.s32.totalorder %v1403, 1
        %vm1420 = vcmp.eq.s32.totalorder %v1404, 1
        %vm1421 = vcmp.eq.s32.totalorder %v1405, 1
        %vm1422 = vcmp.eq.s32.totalorder %v1406, 1
        %vm1423 = vcmp.eq.s32.totalorder %v1407, 1
        %vm1424 = vcmp.eq.s32.totalorder %v1408, 1
        %vm1425 = vcmp.eq.s32.totalorder %v1409, 1
        %vm1426 = vcmp.eq.s32.totalorder %v1410, 1
        %vm1427 = vcmp.eq.s32.totalorder %v1411, 1
        %vm1428 = vcmp.eq.s32.totalorder %v1412, 1
        %vm1429 = vcmp.eq.s32.totalorder %v1413, 1
        %vm1430 = vcmp.eq.s32.totalorder %v1414, 1
        %vm1431 = vcmp.eq.s32.totalorder %v1415, 1
        %vm1432 = vcmp.eq.s32.totalorder %v1416, 1
        %vm1433 = vcmp.eq.s32.totalorder %v1417, 1
        %vm1434 = vcmp.eq.s32.totalorder %v1418, 1
        %v1435 = vsel %vm1419, %v1385, 0.0
        %v1436 = vsel %vm1420, %v1384, 0.0
        %v1437 = vsel %vm1421, %v1383, 0.0
        %v1438 = vsel %vm1422, %v1382, 0.0
        %v1439 = vsel %vm1423, %v1381, 0.0
        %v1440 = vsel %vm1424, %v1380, 0.0
        %v1441 = vsel %vm1425, %v1379, 0.0
        %v1442 = vsel %vm1426, %v1378, 0.0
        %v1443 = vsel %vm1427, %v1377, 0.0
        %v1444 = vsel %vm1428, %v1376, 0.0
        %v1445 = vsel %vm1429, %v1375, 0.0
        %v1446 = vsel %vm1430, %v1374, 0.0
        %v1447 = vsel %vm1431, %v1373, 0.0
        %v1448 = vsel %vm1432, %v1372, 0.0
        %v1449 = vsel %vm1433, %v1371, 0.0
        %v1450 = vsel %vm1434, %v1386, 0.0
        %v1451 = vsel %vm467, %v1435, 0.0
        %v1452 = vsel %vm467, %v1436, 0.0
        %v1453 = vsel %vm467, %v1437, 0.0
        %v1454 = vsel %vm467, %v1438, 0.0
        %v1455 = vsel %vm467, %v1439, 0.0
        %v1456 = vsel %vm467, %v1440, 0.0
        %v1457 = vsel %vm467, %v1441, 0.0
        %v1458 = vsel %vm467, %v1442, 0.0
        %v1459 = vsel %vm467, %v1443, 0.0
        %v1460 = vsel %vm467, %v1444, 0.0
        %v1461 = vsel %vm467, %v1445, 0.0
        %v1462 = vsel %vm467, %v1446, 0.0
        %v1463 = vsel %vm467, %v1447, 0.0
        %v1464 = vsel %vm467, %v1448, 0.0
        %v1465 = vsel %vm467, %v1449, 0.0
        %v1466 = vsel %vm467, %v1450, 0.0
        %1467 = vst [vmem:[#allocation2 + $0x400] sm:$0xff] %v1451
        %1468 = vst [vmem:[#allocation2 + $0x408] sm:$0xff] %v1452
        %1469 = vst [vmem:[#allocation2 + $0x410] sm:$0xff] %v1453
        %1470 = vst [vmem:[#allocation2 + $0x418] sm:$0xff] %v1454
        %1471 = vst [vmem:[#allocation2 + $0x420] sm:$0xff] %v1455
        %1472 = vst [vmem:[#allocation2 + $0x428] sm:$0xff] %v1456
        %1473 = vst [vmem:[#allocation2 + $0x430] sm:$0xff] %v1457
        %1474 = vst [vmem:[#allocation2 + $0x438] sm:$0xff] %v1458
        %1475 = vst [vmem:[#allocation2 + $0x440] sm:$0xff] %v1459
        %1476 = vst [vmem:[#allocation2 + $0x448] sm:$0xff] %v1460
        %1477 = vst [vmem:[#allocation2 + $0x450] sm:$0xff] %v1461
        %1478 = vst [vmem:[#allocation2 + $0x458] sm:$0xff] %v1462
        %1479 = vst [vmem:[#allocation2 + $0x460] sm:$0xff] %v1463
        %1480 = vst [vmem:[#allocation2 + $0x468] sm:$0xff] %v1464
        %1481 = vst [vmem:[#allocation2 + $0x470] sm:$0xff] %v1465
        %1482 = vst [vmem:[#allocation2 + $0x478] sm:$0xff] %v1466
        %v1483 = vld [vmem:[#allocation6] sm:$0xff]
        %v1484 = vld [vmem:[#allocation2] sm:$0xff]
        %v1485 = vld [vmem:[#allocation2 + $0x8] sm:$0xff]
        %v1486 = vld [vmem:[#allocation2 + $0x10] sm:$0xff]
        %v1487 = vld [vmem:[#allocation2 + $0x18] sm:$0xff]
        %v1488 = vld [vmem:[#allocation2 + $0x20] sm:$0xff]
        %v1489 = vld [vmem:[#allocation2 + $0x28] sm:$0xff]
        %v1490 = vld [vmem:[#allocation2 + $0x30] sm:$0xff]
        %v1491 = vld [vmem:[#allocation2 + $0x38] sm:$0xff]
        %v1492 = vld [vmem:[#allocation2 + $0x40] sm:$0xff]
        %v1493 = vld [vmem:[#allocation2 + $0x48] sm:$0xff]
        %v1494 = vld [vmem:[#allocation2 + $0x50] sm:$0xff]
        %v1495 = vld [vmem:[#allocation2 + $0x58] sm:$0xff]
        %v1496 = vld [vmem:[#allocation2 + $0x60] sm:$0xff]
        %v1497 = vld [vmem:[#allocation2 + $0x68] sm:$0xff]
        %v1498 = vld [vmem:[#allocation2 + $0x70] sm:$0xff]
        %v1499 = vld [vmem:[#allocation2 + $0x78] sm:$0xff]
        %v1500 = vld [vmem:[#allocation2 + $0x80] sm:$0xff]
        %v1501 = vld [vmem:[#allocation2 + $0x88] sm:$0xff]
        %v1502 = vld [vmem:[#allocation2 + $0x90] sm:$0xff]
        %v1503 = vld [vmem:[#allocation2 + $0x98] sm:$0xff]
        %v1504 = vld [vmem:[#allocation2 + $0xa0] sm:$0xff]
        %v1505 = vld [vmem:[#allocation2 + $0xa8] sm:$0xff]
        %v1506 = vld [vmem:[#allocation2 + $0xb0] sm:$0xff]
        %v1507 = vld [vmem:[#allocation2 + $0xb8] sm:$0xff]
        %v1508 = vld [vmem:[#allocation2 + $0xc0] sm:$0xff]
        %v1509 = vld [vmem:[#allocation2 + $0xc8] sm:$0xff]
        %v1510 = vld [vmem:[#allocation2 + $0xd0] sm:$0xff]
        %v1511 = vld [vmem:[#allocation2 + $0xd8] sm:$0xff]
        %v1512 = vld [vmem:[#allocation2 + $0xe0] sm:$0xff]
        %v1513 = vld [vmem:[#allocation2 + $0xe8] sm:$0xff]
        %v1514 = vld [vmem:[#allocation2 + $0xf0] sm:$0xff]
        %v1515 = vld [vmem:[#allocation2 + $0xf8] sm:$0xff]
        %v1516 = vld [vmem:[#allocation2 + $0x100] sm:$0xff]
        %v1517 = vld [vmem:[#allocation2 + $0x108] sm:$0xff]
        %v1518 = vld [vmem:[#allocation2 + $0x110] sm:$0xff]
        %v1519 = vld [vmem:[#allocation2 + $0x118] sm:$0xff]
        %v1520 = vld [vmem:[#allocation2 + $0x120] sm:$0xff]
        %v1521 = vld [vmem:[#allocation2 + $0x128] sm:$0xff]
        %v1522 = vld [vmem:[#allocation2 + $0x130] sm:$0xff]
        %v1523 = vld [vmem:[#allocation2 + $0x138] sm:$0xff]
        %v1524 = vld [vmem:[#allocation2 + $0x140] sm:$0xff]
        %v1525 = vld [vmem:[#allocation2 + $0x148] sm:$0xff]
        %v1526 = vld [vmem:[#allocation2 + $0x150] sm:$0xff]
        %v1527 = vld [vmem:[#allocation2 + $0x158] sm:$0xff]
        %v1528 = vld [vmem:[#allocation2 + $0x160] sm:$0xff]
        %v1529 = vld [vmem:[#allocation2 + $0x168] sm:$0xff]
        %v1530 = vld [vmem:[#allocation2 + $0x170] sm:$0xff]
        %v1531 = vld [vmem:[#allocation2 + $0x178] sm:$0xff]
        %v1532 = vld [vmem:[#allocation2 + $0x180] sm:$0xff]
        %v1533 = vld [vmem:[#allocation2 + $0x188] sm:$0xff]
        %v1534 = vld [vmem:[#allocation2 + $0x190] sm:$0xff]
        %v1535 = vld [vmem:[#allocation2 + $0x198] sm:$0xff]
        %v1536 = vld [vmem:[#allocation2 + $0x1a0] sm:$0xff]
        %v1537 = vld [vmem:[#allocation2 + $0x1a8] sm:$0xff]
        %v1538 = vld [vmem:[#allocation2 + $0x1b0] sm:$0xff]
        %v1539 = vld [vmem:[#allocation2 + $0x1b8] sm:$0xff]
        %v1540 = vld [vmem:[#allocation2 + $0x1c0] sm:$0xff]
        %v1541 = vld [vmem:[#allocation2 + $0x1c8] sm:$0xff]
        %v1542 = vld [vmem:[#allocation2 + $0x1d0] sm:$0xff]
        %v1543 = vld [vmem:[#allocation2 + $0x1d8] sm:$0xff]
        %v1544 = vld [vmem:[#allocation2 + $0x1e0] sm:$0xff]
        %v1545 = vld [vmem:[#allocation2 + $0x1e8] sm:$0xff]
        %v1546 = vld [vmem:[#allocation2 + $0x1f0] sm:$0xff]
        %v1547 = vld [vmem:[#allocation2 + $0x1f8] sm:$0xff]
        %v1548 = vld [vmem:[#allocation2 + $0x200] sm:$0xff]
        %v1549 = vld [vmem:[#allocation2 + $0x208] sm:$0xff]
        %v1550 = vld [vmem:[#allocation2 + $0x210] sm:$0xff]
        %v1551 = vld [vmem:[#allocation2 + $0x218] sm:$0xff]
        %v1552 = vld [vmem:[#allocation2 + $0x220] sm:$0xff]
        %v1553 = vld [vmem:[#allocation2 + $0x228] sm:$0xff]
        %v1554 = vld [vmem:[#allocation2 + $0x230] sm:$0xff]
        %v1555 = vld [vmem:[#allocation2 + $0x238] sm:$0xff]
        %v1556 = vld [vmem:[#allocation2 + $0x240] sm:$0xff]
        %v1557 = vld [vmem:[#allocation2 + $0x248] sm:$0xff]
        %v1558 = vld [vmem:[#allocation2 + $0x250] sm:$0xff]
        %v1559 = vld [vmem:[#allocation2 + $0x258] sm:$0xff]
        %v1560 = vld [vmem:[#allocation2 + $0x260] sm:$0xff]
        %v1561 = vld [vmem:[#allocation2 + $0x268] sm:$0xff]
        %v1562 = vld [vmem:[#allocation2 + $0x270] sm:$0xff]
        %v1563 = vld [vmem:[#allocation2 + $0x278] sm:$0xff]
        %v1564 = vld [vmem:[#allocation2 + $0x280] sm:$0xff]
        %v1565 = vld [vmem:[#allocation2 + $0x288] sm:$0xff]
        %v1566 = vld [vmem:[#allocation2 + $0x290] sm:$0xff]
        %v1567 = vld [vmem:[#allocation2 + $0x298] sm:$0xff]
        %v1568 = vld [vmem:[#allocation2 + $0x2a0] sm:$0xff]
        %v1569 = vld [vmem:[#allocation2 + $0x2a8] sm:$0xff]
        %v1570 = vld [vmem:[#allocation2 + $0x2b0] sm:$0xff]
        %v1571 = vld [vmem:[#allocation2 + $0x2b8] sm:$0xff]
        %v1572 = vld [vmem:[#allocation2 + $0x2c0] sm:$0xff]
        %v1573 = vld [vmem:[#allocation2 + $0x2c8] sm:$0xff]
        %v1574 = vld [vmem:[#allocation2 + $0x2d0] sm:$0xff]
        %v1575 = vld [vmem:[#allocation2 + $0x2d8] sm:$0xff]
        %v1576 = vld [vmem:[#allocation2 + $0x2e0] sm:$0xff]
        %v1577 = vld [vmem:[#allocation2 + $0x2e8] sm:$0xff]
        %v1578 = vld [vmem:[#allocation2 + $0x2f0] sm:$0xff]
        %v1579 = vld [vmem:[#allocation2 + $0x2f8] sm:$0xff]
        %v1580 = vld [vmem:[#allocation2 + $0x300] sm:$0xff]
        %v1581 = vld [vmem:[#allocation2 + $0x308] sm:$0xff]
        %v1582 = vld [vmem:[#allocation2 + $0x310] sm:$0xff]
        %v1583 = vld [vmem:[#allocation2 + $0x318] sm:$0xff]
        %v1584 = vld [vmem:[#allocation2 + $0x320] sm:$0xff]
        %v1585 = vld [vmem:[#allocation2 + $0x328] sm:$0xff]
        %v1586 = vld [vmem:[#allocation2 + $0x330] sm:$0xff]
        %v1587 = vld [vmem:[#allocation2 + $0x338] sm:$0xff]
        %v1588 = vld [vmem:[#allocation2 + $0x340] sm:$0xff]
        %v1589 = vld [vmem:[#allocation2 + $0x348] sm:$0xff]
        %v1590 = vld [vmem:[#allocation2 + $0x350] sm:$0xff]
        %v1591 = vld [vmem:[#allocation2 + $0x358] sm:$0xff]
        %v1592 = vld [vmem:[#allocation2 + $0x360] sm:$0xff]
        %v1593 = vld [vmem:[#allocation2 + $0x368] sm:$0xff]
        %v1594 = vld [vmem:[#allocation2 + $0x370] sm:$0xff]
        %v1595 = vld [vmem:[#allocation2 + $0x378] sm:$0xff]
        %v1596 = vld [vmem:[#allocation2 + $0x380] sm:$0xff]
        %v1597 = vld [vmem:[#allocation2 + $0x388] sm:$0xff]
        %v1598 = vld [vmem:[#allocation2 + $0x390] sm:$0xff]
        %v1599 = vld [vmem:[#allocation2 + $0x398] sm:$0xff]
        %v1600 = vld [vmem:[#allocation2 + $0x3a0] sm:$0xff]
        %v1601 = vld [vmem:[#allocation2 + $0x3a8] sm:$0xff]
        %v1602 = vld [vmem:[#allocation2 + $0x3b0] sm:$0xff]
        %v1603 = vld [vmem:[#allocation2 + $0x3b8] sm:$0xff]
        %v1604 = vld [vmem:[#allocation2 + $0x3c0] sm:$0xff]
        %v1605 = vld [vmem:[#allocation2 + $0x3c8] sm:$0xff]
        %v1606 = vld [vmem:[#allocation2 + $0x3d0] sm:$0xff]
        %v1607 = vld [vmem:[#allocation2 + $0x3d8] sm:$0xff]
        %v1608 = vld [vmem:[#allocation2 + $0x3e0] sm:$0xff]
        %v1609 = vld [vmem:[#allocation2 + $0x3e8] sm:$0xff]
        %v1610 = vld [vmem:[#allocation2 + $0x3f0] sm:$0xff]
        %v1611 = vld [vmem:[#allocation2 + $0x3f8] sm:$0xff]
        %v1612 = vld [vmem:[#allocation2 + $0x400] sm:$0xff]
        %v1613 = vld [vmem:[#allocation2 + $0x408] sm:$0xff]
        %v1614 = vld [vmem:[#allocation2 + $0x410] sm:$0xff]
        %v1615 = vld [vmem:[#allocation2 + $0x418] sm:$0xff]
        %v1616 = vld [vmem:[#allocation2 + $0x420] sm:$0xff]
        %v1617 = vld [vmem:[#allocation2 + $0x428] sm:$0xff]
        %v1618 = vld [vmem:[#allocation2 + $0x430] sm:$0xff]
        %v1619 = vld [vmem:[#allocation2 + $0x438] sm:$0xff]
        %v1620 = vld [vmem:[#allocation2 + $0x440] sm:$0xff]
        %v1621 = vld [vmem:[#allocation2 + $0x448] sm:$0xff]
        %v1622 = vld [vmem:[#allocation2 + $0x450] sm:$0xff]
        %v1623 = vld [vmem:[#allocation2 + $0x458] sm:$0xff]
        %v1624 = vld [vmem:[#allocation2 + $0x460] sm:$0xff]
        %v1625 = vld [vmem:[#allocation2 + $0x468] sm:$0xff]
        %v1626 = vld [vmem:[#allocation2 + $0x470] sm:$0xff]
        %v1627 = vld [vmem:[#allocation2 + $0x478] sm:$0xff]
        %vm1628 = vcmask 588800
        %v1630 = vsel %vm1628, %v1483, 0
        %1632 = vmatprep.subr.mxu0 %v1485
        %1633 = vmatpush1.msra.mxu0 %v1484
        %1634 = vmatprep.subr.mxu0 %v1501
        %1635 = vmatpush1.msra.mxu0 %v1500
        %1636 = vmatprep.subr.mxu0 %v1517
        %1637 = vmatpush1.msra.mxu0 %v1516
        %1638 = vmatprep.subr.mxu0 %v1533
        %1639 = vmatpush1.msra.mxu0 %v1532
        %1640 = vmatprep.subr.mxu0 %v1549
        %1641 = vmatpush1.msra.mxu0 %v1548
        %1642 = vmatprep.subr.mxu0 %v1565
        %1643 = vmatpush1.msra.mxu0 %v1564
        %1644 = vmatprep.subr.mxu0 %v1581
        %1645 = vmatpush1.msra.mxu0 %v1580
        %1646 = vmatprep.subr.mxu0 %v1597
        %1647 = vmatpush1.msra.mxu0 %v1596
        %1648 = vmatprep.subr.mxu0 %v1613
        %1649 = vmatpush1.msra.mxu0 %v1612
        %1650 = vmatprep.subr.mxu0 0.0
        %1651 = vmatpush1.msra.mxu0 0.0
        %1652 = vmatprep.subr.mxu0 0.0
        %1653 = vmatpush1.msra.mxu0 0.0
        %1654 = vmatprep.subr.mxu0 0.0
        %1655 = vmatpush1.msra.mxu0 0.0
        %1656 = vmatprep.subr.mxu0 0.0
        %1657 = vmatpush1.msra.mxu0 0.0
        %1658 = vmatprep.subr.mxu0 0.0
        %1659 = vmatpush1.msra.mxu0 0.0
        %1660 = vmatprep.subr.mxu0 0.0
        %1661 = vmatpush1.msra.mxu0 0.0
        %1662 = vmatprep.subr.mxu0 0.0
        %1663 = vmatpush1.msra.mxu0 0.0
        %1664 = vmatprep.subr.mxu0 0.0
        %1665 = vmatpush1.msra.mxu0 0.0
        %1666 = vmatprep.subr.mxu0 0.0
        %1667 = vmatpush1.msra.mxu0 0.0
        %1668 = vmatprep.subr.mxu0 0.0
        %1669 = vmatpush1.msra.mxu0 0.0
        %1670 = vmatprep.subr.mxu0 0.0
        %1671 = vmatpush1.msra.mxu0 0.0
        %1672 = vmatprep.subr.mxu0 0.0
        %1673 = vmatpush1.msra.mxu0 0.0
        %1674 = vmatprep.subr.mxu0 0.0
        %1675 = vmatpush1.msra.mxu0 0.0
        %1676 = vmatprep.subr.mxu0 0.0
        %1677 = vmatpush1.msra.mxu0 0.0
        %1678 = vmatprep.subr.mxu0 0.0
        %1679 = vmatpush1.msra.mxu0 0.0
        %1680 = vmatprep.subr.mxu0 0.0
        %1681 = vmatpush1.msra.mxu0 0.0
        %1682 = vmatprep.subr.mxu0 0.0
        %1683 = vmatpush1.msra.mxu0 0.0
        %1684 = vmatprep.subr.mxu0 0.0
        %1685 = vmatpush1.msra.mxu0 0.0
        %1686 = vmatprep.subr.mxu0 0.0
        %1687 = vmatpush1.msra.mxu0 0.0
        %1688 = vmatprep.subr.mxu0 0.0
        %1689 = vmatpush1.msra.mxu0 0.0
        %1690 = vmatprep.subr.mxu0 0.0
        %1691 = vmatpush1.msra.mxu0 0.0
        %1692 = vmatprep.subr.mxu0 0.0
        %1693 = vmatpush1.msra.mxu0 0.0
        %1694 = vmatprep.subr.mxu0 0.0
        %1695 = vmatpush1.msra.mxu0 0.0
        %1696 = vmatprep.mubr.f32.mxu0 0.0
        %1697 = vmatmul.mubr.f32.gmra.mrb[0].mxu0 %v1630
        %v1698 = vpop.f32.mrb[0].mxu0
        %v1699 = vadd.f32 0.0, %v1698
        %v1700 = vpop.f32.mrb[0].mxu0
        %v1701 = vadd.f32 0.0, %v1700
        %1702 = vdwg.mxu0
        %1703 = vmatprep.subr.mxu0 %v1487
        %1704 = vmatpush1.msra.mxu0 %v1486
        %1705 = vmatprep.subr.mxu0 %v1503
        %1706 = vmatpush1.msra.mxu0 %v1502
        %1707 = vmatprep.subr.mxu0 %v1519
        %1708 = vmatpush1.msra.mxu0 %v1518
        %1709 = vmatprep.subr.mxu0 %v1535
        %1710 = vmatpush1.msra.mxu0 %v1534
        %1711 = vmatprep.subr.mxu0 %v1551
        %1712 = vmatpush1.msra.mxu0 %v1550
        %1713 = vmatprep.subr.mxu0 %v1567
        %1714 = vmatpush1.msra.mxu0 %v1566
        %1715 = vmatprep.subr.mxu0 %v1583
        %1716 = vmatpush1.msra.mxu0 %v1582
        %1717 = vmatprep.subr.mxu0 %v1599
        %1718 = vmatpush1.msra.mxu0 %v1598
        %1719 = vmatprep.subr.mxu0 %v1615
        %1720 = vmatpush1.msra.mxu0 %v1614
        %1721 = vmatprep.subr.mxu0 0.0
        %1722 = vmatpush1.msra.mxu0 0.0
        %1723 = vmatprep.subr.mxu0 0.0
        %1724 = vmatpush1.msra.mxu0 0.0
        %1725 = vmatprep.subr.mxu0 0.0
        %1726 = vmatpush1.msra.mxu0 0.0
        %1727 = vmatprep.subr.mxu0 0.0
        %1728 = vmatpush1.msra.mxu0 0.0
        %1729 = vmatprep.subr.mxu0 0.0
        %1730 = vmatpush1.msra.mxu0 0.0
        %1731 = vmatprep.subr.mxu0 0.0
        %1732 = vmatpush1.msra.mxu0 0.0
        %1733 = vmatprep.subr.mxu0 0.0
        %1734 = vmatpush1.msra.mxu0 0.0
        %1735 = vmatprep.subr.mxu0 0.0
        %1736 = vmatpush1.msra.mxu0 0.0
        %1737 = vmatprep.subr.mxu0 0.0
        %1738 = vmatpush1.msra.mxu0 0.0
        %1739 = vmatprep.subr.mxu0 0.0
        %1740 = vmatpush1.msra.mxu0 0.0
        %1741 = vmatprep.subr.mxu0 0.0
        %1742 = vmatpush1.msra.mxu0 0.0
        %1743 = vmatprep.subr.mxu0 0.0
        %1744 = vmatpush1.msra.mxu0 0.0
        %1745 = vmatprep.subr.mxu0 0.0
        %1746 = vmatpush1.msra.mxu0 0.0
        %1747 = vmatprep.subr.mxu0 0.0
        %1748 = vmatpush1.msra.mxu0 0.0
        %1749 = vmatprep.subr.mxu0 0.0
        %1750 = vmatpush1.msra.mxu0 0.0
        %1751 = vmatprep.subr.mxu0 0.0
        %1752 = vmatpush1.msra.mxu0 0.0
        %1753 = vmatprep.subr.mxu0 0.0
        %1754 = vmatpush1.msra.mxu0 0.0
        %1755 = vmatprep.subr.mxu0 0.0
        %1756 = vmatpush1.msra.mxu0 0.0
        %1757 = vmatprep.subr.mxu0 0.0
        %1758 = vmatpush1.msra.mxu0 0.0
        %1759 = vmatprep.subr.mxu0 0.0
        %1760 = vmatpush1.msra.mxu0 0.0
        %1761 = vmatprep.subr.mxu0 0.0
        %1762 = vmatpush1.msra.mxu0 0.0
        %1763 = vmatprep.subr.mxu0 0.0
        %1764 = vmatpush1.msra.mxu0 0.0
        %1765 = vmatprep.subr.mxu0 0.0
        %1766 = vmatpush1.msra.mxu0 0.0
        %1767 = vmatprep.mubr.f32.mxu0 0.0
        %1768 = vmatmul.mubr.f32.gmra.mrb[0].mxu0 %v1630
        %v1769 = vpop.f32.mrb[0].mxu0
        %v1770 = vadd.f32 0.0, %v1769
        %v1771 = vpop.f32.mrb[0].mxu0
        %v1772 = vadd.f32 0.0, %v1771
        %1773 = vdwg.mxu0
        %1774 = vmatprep.subr.mxu0 %v1489
        %1775 = vmatpush1.msra.mxu0 %v1488
        %1776 = vmatprep.subr.mxu0 %v1505
        %1777 = vmatpush1.msra.mxu0 %v1504
        %1778 = vmatprep.subr.mxu0 %v1521
        %1779 = vmatpush1.msra.mxu0 %v1520
        %1780 = vmatprep.subr.mxu0 %v1537
        %1781 = vmatpush1.msra.mxu0 %v1536
        %1782 = vmatprep.subr.mxu0 %v1553
        %1783 = vmatpush1.msra.mxu0 %v1552
        %1784 = vmatprep.subr.mxu0 %v1569
        %1785 = vmatpush1.msra.mxu0 %v1568
        %1786 = vmatprep.subr.mxu0 %v1585
        %1787 = vmatpush1.msra.mxu0 %v1584
        %1788 = vmatprep.subr.mxu0 %v1601
        %1789 = vmatpush1.msra.mxu0 %v1600
        %1790 = vmatprep.subr.mxu0 %v1617
        %1791 = vmatpush1.msra.mxu0 %v1616
        %1792 = vmatprep.subr.mxu0 0.0
        %1793 = vmatpush1.msra.mxu0 0.0
        %1794 = vmatprep.subr.mxu0 0.0
        %1795 = vmatpush1.msra.mxu0 0.0
        %1796 = vmatprep.subr.mxu0 0.0
        %1797 = vmatpush1.msra.mxu0 0.0
        %1798 = vmatprep.subr.mxu0 0.0
        %1799 = vmatpush1.msra.mxu0 0.0
        %1800 = vmatprep.subr.mxu0 0.0
        %1801 = vmatpush1.msra.mxu0 0.0
        %1802 = vmatprep.subr.mxu0 0.0
        %1803 = vmatpush1.msra.mxu0 0.0
        %1804 = vmatprep.subr.mxu0 0.0
        %1805 = vmatpush1.msra.mxu0 0.0
        %1806 = vmatprep.subr.mxu0 0.0
        %1807 = vmatpush1.msra.mxu0 0.0
        %1808 = vmatprep.subr.mxu0 0.0
        %1809 = vmatpush1.msra.mxu0 0.0
        %1810 = vmatprep.subr.mxu0 0.0
        %1811 = vmatpush1.msra.mxu0 0.0
        %1812 = vmatprep.subr.mxu0 0.0
        %1813 = vmatpush1.msra.mxu0 0.0
        %1814 = vmatprep.subr.mxu0 0.0
        %1815 = vmatpush1.msra.mxu0 0.0
        %1816 = vmatprep.subr.mxu0 0.0
        %1817 = vmatpush1.msra.mxu0 0.0
        %1818 = vmatprep.subr.mxu0 0.0
        %1819 = vmatpush1.msra.mxu0 0.0
        %1820 = vmatprep.subr.mxu0 0.0
        %1821 = vmatpush1.msra.mxu0 0.0
        %1822 = vmatprep.subr.mxu0 0.0
        %1823 = vmatpush1.msra.mxu0 0.0
        %1824 = vmatprep.subr.mxu0 0.0
        %1825 = vmatpush1.msra.mxu0 0.0
        %1826 = vmatprep.subr.mxu0 0.0
        %1827 = vmatpush1.msra.mxu0 0.0
        %1828 = vmatprep.subr.mxu0 0.0
        %1829 = vmatpush1.msra.mxu0 0.0
        %1830 = vmatprep.subr.mxu0 0.0
        %1831 = vmatpush1.msra.mxu0 0.0
        %1832 = vmatprep.subr.mxu0 0.0
        %1833 = vmatpush1.msra.mxu0 0.0
        %1834 = vmatprep.subr.mxu0 0.0
        %1835 = vmatpush1.msra.mxu0 0.0
        %1836 = vmatprep.subr.mxu0 0.0
        %1837 = vmatpush1.msra.mxu0 0.0
        %1838 = vmatprep.mubr.f32.mxu0 0.0
        %1839 = vmatmul.mubr.f32.gmra.mrb[0].mxu0 %v1630
        %v1840 = vpop.f32.mrb[0].mxu0
        %v1841 = vadd.f32 0.0, %v1840
        %v1842 = vpop.f32.mrb[0].mxu0
        %v1843 = vadd.f32 0.0, %v1842
        %1844 = vdwg.mxu0
        %1845 = vmatprep.subr.mxu0 %v1491
        %1846 = vmatpush1.msra.mxu0 %v1490
        %1847 = vmatprep.subr.mxu0 %v1507
        %1848 = vmatpush1.msra.mxu0 %v1506
        %1849 = vmatprep.subr.mxu0 %v1523
        %1850 = vmatpush1.msra.mxu0 %v1522
        %1851 = vmatprep.subr.mxu0 %v1539
        %1852 = vmatpush1.msra.mxu0 %v1538
        %1853 = vmatprep.subr.mxu0 %v1555
        %1854 = vmatpush1.msra.mxu0 %v1554
        %1855 = vmatprep.subr.mxu0 %v1571
        %1856 = vmatpush1.msra.mxu0 %v1570
        %1857 = vmatprep.subr.mxu0 %v1587
        %1858 = vmatpush1.msra.mxu0 %v1586
        %1859 = vmatprep.subr.mxu0 %v1603
        %1860 = vmatpush1.msra.mxu0 %v1602
        %1861 = vmatprep.subr.mxu0 %v1619
        %1862 = vmatpush1.msra.mxu0 %v1618
        %1863 = vmatprep.subr.mxu0 0.0
        %1864 = vmatpush1.msra.mxu0 0.0
        %1865 = vmatprep.subr.mxu0 0.0
        %1866 = vmatpush1.msra.mxu0 0.0
        %1867 = vmatprep.subr.mxu0 0.0
        %1868 = vmatpush1.msra.mxu0 0.0
        %1869 = vmatprep.subr.mxu0 0.0
        %1870 = vmatpush1.msra.mxu0 0.0
        %1871 = vmatprep.subr.mxu0 0.0
        %1872 = vmatpush1.msra.mxu0 0.0
        %1873 = vmatprep.subr.mxu0 0.0
        %1874 = vmatpush1.msra.mxu0 0.0
        %1875 = vmatprep.subr.mxu0 0.0
        %1876 = vmatpush1.msra.mxu0 0.0
        %1877 = vmatprep.subr.mxu0 0.0
        %1878 = vmatpush1.msra.mxu0 0.0
        %1879 = vmatprep.subr.mxu0 0.0
        %1880 = vmatpush1.msra.mxu0 0.0
        %1881 = vmatprep.subr.mxu0 0.0
        %1882 = vmatpush1.msra.mxu0 0.0
        %1883 = vmatprep.subr.mxu0 0.0
        %1884 = vmatpush1.msra.mxu0 0.0
        %1885 = vmatprep.subr.mxu0 0.0
        %1886 = vmatpush1.msra.mxu0 0.0
        %1887 = vmatprep.subr.mxu0 0.0
        %1888 = vmatpush1.msra.mxu0 0.0
        %1889 = vmatprep.subr.mxu0 0.0
        %1890 = vmatpush1.msra.mxu0 0.0
        %1891 = vmatprep.subr.mxu0 0.0
        %1892 = vmatpush1.msra.mxu0 0.0
        %1893 = vmatprep.subr.mxu0 0.0
        %1894 = vmatpush1.msra.mxu0 0.0
        %1895 = vmatprep.subr.mxu0 0.0
        %1896 = vmatpush1.msra.mxu0 0.0
        %1897 = vmatprep.subr.mxu0 0.0
        %1898 = vmatpush1.msra.mxu0 0.0
        %1899 = vmatprep.subr.mxu0 0.0
        %1900 = vmatpush1.msra.mxu0 0.0
        %1901 = vmatprep.subr.mxu0 0.0
        %1902 = vmatpush1.msra.mxu0 0.0
        %1903 = vmatprep.subr.mxu0 0.0
        %1904 = vmatpush1.msra.mxu0 0.0
        %1905 = vmatprep.subr.mxu0 0.0
        %1906 = vmatpush1.msra.mxu0 0.0
        %1907 = vmatprep.subr.mxu0 0.0
        %1908 = vmatpush1.msra.mxu0 0.0
        %1909 = vmatprep.mubr.f32.mxu0 0.0
        %1910 = vmatmul.mubr.f32.gmra.mrb[0].mxu0 %v1630
        %v1911 = vpop.f32.mrb[0].mxu0
        %v1912 = vadd.f32 0.0, %v1911
        %v1913 = vpop.f32.mrb[0].mxu0
        %v1914 = vadd.f32 0.0, %v1913
        %1915 = vdwg.mxu0
        %1916 = vmatprep.subr.mxu0 %v1493
        %1917 = vmatpush1.msra.mxu0 %v1492
        %1918 = vmatprep.subr.mxu0 %v1509
        %1919 = vmatpush1.msra.mxu0 %v1508
        %1920 = vmatprep.subr.mxu0 %v1525
        %1921 = vmatpush1.msra.mxu0 %v1524
        %1922 = vmatprep.subr.mxu0 %v1541
        %1923 = vmatpush1.msra.mxu0 %v1540
        %1924 = vmatprep.subr.mxu0 %v1557
        %1925 = vmatpush1.msra.mxu0 %v1556
        %1926 = vmatprep.subr.mxu0 %v1573
        %1927 = vmatpush1.msra.mxu0 %v1572
        %1928 = vmatprep.subr.mxu0 %v1589
        %1929 = vmatpush1.msra.mxu0 %v1588
        %1930 = vmatprep.subr.mxu0 %v1605
        %1931 = vmatpush1.msra.mxu0 %v1604
        %1932 = vmatprep.subr.mxu0 %v1621
        %1933 = vmatpush1.msra.mxu0 %v1620
        %1934 = vmatprep.subr.mxu0 0.0
        %1935 = vmatpush1.msra.mxu0 0.0
        %1936 = vmatprep.subr.mxu0 0.0
        %1937 = vmatpush1.msra.mxu0 0.0
        %1938 = vmatprep.subr.mxu0 0.0
        %1939 = vmatpush1.msra.mxu0 0.0
        %1940 = vmatprep.subr.mxu0 0.0
        %1941 = vmatpush1.msra.mxu0 0.0
        %1942 = vmatprep.subr.mxu0 0.0
        %1943 = vmatpush1.msra.mxu0 0.0
        %1944 = vmatprep.subr.mxu0 0.0
        %1945 = vmatpush1.msra.mxu0 0.0
        %1946 = vmatprep.subr.mxu0 0.0
        %1947 = vmatpush1.msra.mxu0 0.0
        %1948 = vmatprep.subr.mxu0 0.0
        %1949 = vmatpush1.msra.mxu0 0.0
        %1950 = vmatprep.subr.mxu0 0.0
        %1951 = vmatpush1.msra.mxu0 0.0
        %1952 = vmatprep.subr.mxu0 0.0
        %1953 = vmatpush1.msra.mxu0 0.0
        %1954 = vmatprep.subr.mxu0 0.0
        %1955 = vmatpush1.msra.mxu0 0.0
        %1956 = vmatprep.subr.mxu0 0.0
        %1957 = vmatpush1.msra.mxu0 0.0
        %1958 = vmatprep.subr.mxu0 0.0
        %1959 = vmatpush1.msra.mxu0 0.0
        %1960 = vmatprep.subr.mxu0 0.0
        %1961 = vmatpush1.msra.mxu0 0.0
        %1962 = vmatprep.subr.mxu0 0.0
        %1963 = vmatpush1.msra.mxu0 0.0
        %1964 = vmatprep.subr.mxu0 0.0
        %1965 = vmatpush1.msra.mxu0 0.0
        %1966 = vmatprep.subr.mxu0 0.0
        %1967 = vmatpush1.msra.mxu0 0.0
        %1968 = vmatprep.subr.mxu0 0.0
        %1969 = vmatpush1.msra.mxu0 0.0
        %1970 = vmatprep.subr.mxu0 0.0
        %1971 = vmatpush1.msra.mxu0 0.0
        %1972 = vmatprep.subr.mxu0 0.0
        %1973 = vmatpush1.msra.mxu0 0.0
        %1974 = vmatprep.subr.mxu0 0.0
        %1975 = vmatpush1.msra.mxu0 0.0
        %1976 = vmatprep.subr.mxu0 0.0
        %1977 = vmatpush1.msra.mxu0 0.0
        %1978 = vmatprep.subr.mxu0 0.0
        %1979 = vmatpush1.msra.mxu0 0.0
        %1980 = vmatprep.mubr.f32.mxu0 0.0
        %1981 = vmatmul.mubr.f32.gmra.mrb[0].mxu0 %v1630
        %v1982 = vpop.f32.mrb[0].mxu0
        %v1983 = vadd.f32 0.0, %v1982
        %v1984 = vpop.f32.mrb[0].mxu0
        %v1985 = vadd.f32 0.0, %v1984
        %1986 = vdwg.mxu0
        %1987 = vmatprep.subr.mxu0 %v1495
        %1988 = vmatpush1.msra.mxu0 %v1494
        %1989 = vmatprep.subr.mxu0 %v1511
        %1990 = vmatpush1.msra.mxu0 %v1510
        %1991 = vmatprep.subr.mxu0 %v1527
        %1992 = vmatpush1.msra.mxu0 %v1526
        %1993 = vmatprep.subr.mxu0 %v1543
        %1994 = vmatpush1.msra.mxu0 %v1542
        %1995 = vmatprep.subr.mxu0 %v1559
        %1996 = vmatpush1.msra.mxu0 %v1558
        %1997 = vmatprep.subr.mxu0 %v1575
        %1998 = vmatpush1.msra.mxu0 %v1574
        %1999 = vmatprep.subr.mxu0 %v1591
        %2000 = vmatpush1.msra.mxu0 %v1590
        %2001 = vmatprep.subr.mxu0 %v1607
        %2002 = vmatpush1.msra.mxu0 %v1606
        %2003 = vmatprep.subr.mxu0 %v1623
        %2004 = vmatpush1.msra.mxu0 %v1622
        %2005 = vmatprep.subr.mxu0 0.0
        %2006 = vmatpush1.msra.mxu0 0.0
        %2007 = vmatprep.subr.mxu0 0.0
        %2008 = vmatpush1.msra.mxu0 0.0
        %2009 = vmatprep.subr.mxu0 0.0
        %2010 = vmatpush1.msra.mxu0 0.0
        %2011 = vmatprep.subr.mxu0 0.0
        %2012 = vmatpush1.msra.mxu0 0.0
        %2013 = vmatprep.subr.mxu0 0.0
        %2014 = vmatpush1.msra.mxu0 0.0
        %2015 = vmatprep.subr.mxu0 0.0
        %2016 = vmatpush1.msra.mxu0 0.0
        %2017 = vmatprep.subr.mxu0 0.0
        %2018 = vmatpush1.msra.mxu0 0.0
        %2019 = vmatprep.subr.mxu0 0.0
        %2020 = vmatpush1.msra.mxu0 0.0
        %2021 = vmatprep.subr.mxu0 0.0
        %2022 = vmatpush1.msra.mxu0 0.0
        %2023 = vmatprep.subr.mxu0 0.0
        %2024 = vmatpush1.msra.mxu0 0.0
        %2025 = vmatprep.subr.mxu0 0.0
        %2026 = vmatpush1.msra.mxu0 0.0
        %2027 = vmatprep.subr.mxu0 0.0
        %2028 = vmatpush1.msra.mxu0 0.0
        %2029 = vmatprep.subr.mxu0 0.0
        %2030 = vmatpush1.msra.mxu0 0.0
        %2031 = vmatprep.subr.mxu0 0.0
        %2032 = vmatpush1.msra.mxu0 0.0
        %2033 = vmatprep.subr.mxu0 0.0
        %2034 = vmatpush1.msra.mxu0 0.0
        %2035 = vmatprep.subr.mxu0 0.0
        %2036 = vmatpush1.msra.mxu0 0.0
        %2037 = vmatprep.subr.mxu0 0.0
        %2038 = vmatpush1.msra.mxu0 0.0
        %2039 = vmatprep.subr.mxu0 0.0
        %2040 = vmatpush1.msra.mxu0 0.0
        %2041 = vmatprep.subr.mxu0 0.0
        %2042 = vmatpush1.msra.mxu0 0.0
        %2043 = vmatprep.subr.mxu0 0.0
        %2044 = vmatpush1.msra.mxu0 0.0
        %2045 = vmatprep.subr.mxu0 0.0
        %2046 = vmatpush1.msra.mxu0 0.0
        %2047 = vmatprep.subr.mxu0 0.0
        %2048 = vmatpush1.msra.mxu0 0.0
        %2049 = vmatprep.subr.mxu0 0.0
        %2050 = vmatpush1.msra.mxu0 0.0
        %2051 = vmatprep.mubr.f32.mxu0 0.0
        %2052 = vmatmul.mubr.f32.gmra.mrb[0].mxu0 %v1630
        %v2053 = vpop.f32.mrb[0].mxu0
        %v2054 = vadd.f32 0.0, %v2053
        %v2055 = vpop.f32.mrb[0].mxu0
        %v2056 = vadd.f32 0.0, %v2055
        %2057 = vdwg.mxu0
        %2058 = vmatprep.subr.mxu0 %v1497
        %2059 = vmatpush1.msra.mxu0 %v1496
        %2060 = vmatprep.subr.mxu0 %v1513
        %2061 = vmatpush1.msra.mxu0 %v1512
        %2062 = vmatprep.subr.mxu0 %v1529
        %2063 = vmatpush1.msra.mxu0 %v1528
        %2064 = vmatprep.subr.mxu0 %v1545
        %2065 = vmatpush1.msra.mxu0 %v1544
        %2066 = vmatprep.subr.mxu0 %v1561
        %2067 = vmatpush1.msra.mxu0 %v1560
        %2068 = vmatprep.subr.mxu0 %v1577
        %2069 = vmatpush1.msra.mxu0 %v1576
        %2070 = vmatprep.subr.mxu0 %v1593
        %2071 = vmatpush1.msra.mxu0 %v1592
        %2072 = vmatprep.subr.mxu0 %v1609
        %2073 = vmatpush1.msra.mxu0 %v1608
        %2074 = vmatprep.subr.mxu0 %v1625
        %2075 = vmatpush1.msra.mxu0 %v1624
        %2076 = vmatprep.subr.mxu0 0.0
        %2077 = vmatpush1.msra.mxu0 0.0
        %2078 = vmatprep.subr.mxu0 0.0
        %2079 = vmatpush1.msra.mxu0 0.0
        %2080 = vmatprep.subr.mxu0 0.0
        %2081 = vmatpush1.msra.mxu0 0.0
        %2082 = vmatprep.subr.mxu0 0.0
        %2083 = vmatpush1.msra.mxu0 0.0
        %2084 = vmatprep.subr.mxu0 0.0
        %2085 = vmatpush1.msra.mxu0 0.0
        %2086 = vmatprep.subr.mxu0 0.0
        %2087 = vmatpush1.msra.mxu0 0.0
        %2088 = vmatprep.subr.mxu0 0.0
        %2089 = vmatpush1.msra.mxu0 0.0
        %2090 = vmatprep.subr.mxu0 0.0
        %2091 = vmatpush1.msra.mxu0 0.0
        %2092 = vmatprep.subr.mxu0 0.0
        %2093 = vmatpush1.msra.mxu0 0.0
        %2094 = vmatprep.subr.mxu0 0.0
        %2095 = vmatpush1.msra.mxu0 0.0
        %2096 = vmatprep.subr.mxu0 0.0
        %2097 = vmatpush1.msra.mxu0 0.0
        %2098 = vmatprep.subr.mxu0 0.0
        %2099 = vmatpush1.msra.mxu0 0.0
        %2100 = vmatprep.subr.mxu0 0.0
        %2101 = vmatpush1.msra.mxu0 0.0
        %2102 = vmatprep.subr.mxu0 0.0
        %2103 = vmatpush1.msra.mxu0 0.0
        %2104 = vmatprep.subr.mxu0 0.0
        %2105 = vmatpush1.msra.mxu0 0.0
        %2106 = vmatprep.subr.mxu0 0.0
        %2107 = vmatpush1.msra.mxu0 0.0
        %2108 = vmatprep.subr.mxu0 0.0
        %2109 = vmatpush1.msra.mxu0 0.0
        %2110 = vmatprep.subr.mxu0 0.0
        %2111 = vmatpush1.msra.mxu0 0.0
        %2112 = vmatprep.subr.mxu0 0.0
        %2113 = vmatpush1.msra.mxu0 0.0
        %2114 = vmatprep.subr.mxu0 0.0
        %2115 = vmatpush1.msra.mxu0 0.0
        %2116 = vmatprep.subr.mxu0 0.0
        %2117 = vmatpush1.msra.mxu0 0.0
        %2118 = vmatprep.subr.mxu0 0.0
        %2119 = vmatpush1.msra.mxu0 0.0
        %2120 = vmatprep.subr.mxu0 0.0
        %2121 = vmatpush1.msra.mxu0 0.0
        %2122 = vmatprep.mubr.f32.mxu0 0.0
        %2123 = vmatmul.mubr.f32.gmra.mrb[0].mxu0 %v1630
        %v2124 = vpop.f32.mrb[0].mxu0
        %v2125 = vadd.f32 0.0, %v2124
        %v2126 = vpop.f32.mrb[0].mxu0
        %v2127 = vadd.f32 0.0, %v2126
        %2128 = vdwg.mxu0
        %2129 = vmatprep.subr.mxu0 %v1499
        %2130 = vmatpush1.msra.mxu0 %v1498
        %2131 = vmatprep.subr.mxu0 %v1515
        %2132 = vmatpush1.msra.mxu0 %v1514
        %2133 = vmatprep.subr.mxu0 %v1531
        %2134 = vmatpush1.msra.mxu0 %v1530
        %2135 = vmatprep.subr.mxu0 %v1547
        %2136 = vmatpush1.msra.mxu0 %v1546
        %2137 = vmatprep.subr.mxu0 %v1563
        %2138 = vmatpush1.msra.mxu0 %v1562
        %2139 = vmatprep.subr.mxu0 %v1579
        %2140 = vmatpush1.msra.mxu0 %v1578
        %2141 = vmatprep.subr.mxu0 %v1595
        %2142 = vmatpush1.msra.mxu0 %v1594
        %2143 = vmatprep.subr.mxu0 %v1611
        %2144 = vmatpush1.msra.mxu0 %v1610
        %2145 = vmatprep.subr.mxu0 %v1627
        %2146 = vmatpush1.msra.mxu0 %v1626
        %2147 = vmatprep.subr.mxu0 0.0
        %2148 = vmatpush1.msra.mxu0 0.0
        %2149 = vmatprep.subr.mxu0 0.0
        %2150 = vmatpush1.msra.mxu0 0.0
        %2151 = vmatprep.subr.mxu0 0.0
        %2152 = vmatpush1.msra.mxu0 0.0
        %2153 = vmatprep.subr.mxu0 0.0
        %2154 = vmatpush1.msra.mxu0 0.0
        %2155 = vmatprep.subr.mxu0 0.0
        %2156 = vmatpush1.msra.mxu0 0.0
        %2157 = vmatprep.subr.mxu0 0.0
        %2158 = vmatpush1.msra.mxu0 0.0
        %2159 = vmatprep.subr.mxu0 0.0
        %2160 = vmatpush1.msra.mxu0 0.0
        %2161 = vmatprep.subr.mxu0 0.0
        %2162 = vmatpush1.msra.mxu0 0.0
        %2163 = vmatprep.subr.mxu0 0.0
        %2164 = vmatpush1.msra.mxu0 0.0
        %2165 = vmatprep.subr.mxu0 0.0
        %2166 = vmatpush1.msra.mxu0 0.0
        %2167 = vmatprep.subr.mxu0 0.0
        %2168 = vmatpush1.msra.mxu0 0.0
        %2169 = vmatprep.subr.mxu0 0.0
        %2170 = vmatpush1.msra.mxu0 0.0
        %2171 = vmatprep.subr.mxu0 0.0
        %2172 = vmatpush1.msra.mxu0 0.0
        %2173 = vmatprep.subr.mxu0 0.0
        %2174 = vmatpush1.msra.mxu0 0.0
        %2175 = vmatprep.subr.mxu0 0.0
        %2176 = vmatpush1.msra.mxu0 0.0
        %2177 = vmatprep.subr.mxu0 0.0
        %2178 = vmatpush1.msra.mxu0 0.0
        %2179 = vmatprep.subr.mxu0 0.0
        %2180 = vmatpush1.msra.mxu0 0.0
        %2181 = vmatprep.subr.mxu0 0.0
        %2182 = vmatpush1.msra.mxu0 0.0
        %2183 = vmatprep.subr.mxu0 0.0
        %2184 = vmatpush1.msra.mxu0 0.0
        %2185 = vmatprep.subr.mxu0 0.0
        %2186 = vmatpush1.msra.mxu0 0.0
        %2187 = vmatprep.subr.mxu0 0.0
        %2188 = vmatpush1.msra.mxu0 0.0
        %2189 = vmatprep.subr.mxu0 0.0
        %2190 = vmatpush1.msra.mxu0 0.0
        %2191 = vmatprep.subr.mxu0 0.0
        %2192 = vmatpush1.msra.mxu0 0.0
        %2193 = vmatprep.mubr.f32.mxu0 0.0
        %2194 = vmatmul.mubr.f32.gmra.mrb[0].mxu0 %v1630
        %v2195 = vpop.f32.mrb[0].mxu0
        %v2196 = vadd.f32 0.0, %v2195
        %v2197 = vpop.f32.mrb[0].mxu0
        %v2198 = vadd.f32 0.0, %v2197
        %2199 = vdwg.mxu0
        %2200 = vst [vmem:[%s190] sm:$0xff] %v1699
        %2201 = vst [vmem:[%s190 + $0x8] sm:$0xff] %v1701
        %2202 = vst [vmem:[%s190 + $0x10] sm:$0xff] %v1770
        %2203 = vst [vmem:[%s190 + $0x18] sm:$0xff] %v1772
        %2204 = vst [vmem:[%s190 + $0x20] sm:$0xff] %v1841
        %2205 = vst [vmem:[%s190 + $0x28] sm:$0xff] %v1843
        %2206 = vst [vmem:[%s190 + $0x30] sm:$0xff] %v1912
        %2207 = vst [vmem:[%s190 + $0x38] sm:$0xff] %v1914
        %2208 = vst [vmem:[%s190 + $0x40] sm:$0xff] %v1983
        %2209 = vst [vmem:[%s190 + $0x48] sm:$0xff] %v1985
        %2210 = vst [vmem:[%s190 + $0x50] sm:$0xff] %v2054
        %2211 = vst [vmem:[%s190 + $0x58] sm:$0xff] %v2056
        %2212 = vst [vmem:[%s190 + $0x60] sm:$0xff] %v2125
        %2213 = vst [vmem:[%s190 + $0x68] sm:$0xff] %v2127
        %2214 = vst [vmem:[%s190 + $0x70] sm:$0xff] %v2196
        %2215 = vst [vmem:[%s190 + $0x78] sm:$0xff] %v2198
        %s2216 = sand.u32 %s91, 1
        %s2217 = scalar_lea.sflag [#allocation5], %s2216
        %s2218 = sand.u32 %s91, 1
        %s2219 = smul.addr %s2218, 128
        %s2220 = scalar_lea.vmem [#allocation8], %s2219
        // Predicated region
        $region37: #{set_block_wrapper_forward.1} parent=27 // pred_check
          %p2221 = pneg %p101
        $region38: #{set_block_wrapper_forward.1} parent=27 // pred_check_branch
          %2223 = sbr.rel (%p2221) target = $region40
        $region39: #{set_block_wrapper_forward.1} parent=27 // pred_region
          %s2224 = smul.u32 16, %s25
          %s2226 = ssub.s32 2048, 2048
          %2227 = vsyncadd %s2217, %s2226
          %s2228 = smul.addr %s24, 16
          %s2229 = sadd.s32 %s2224, %s2228
          %s2230 = smul.addr %s2229, 128
          %s2231 = scalar_lea.hbm %s2, %s2230
          %s2233 = sshll.u32 %s2220, 4
          %s2234 = int_to_ptr.vmem [resolvable:$true] %s2233
          %2236 = dma.vmem_to_hbm [thread:$0]  %s2234, 2048, %s2231, %s2217
        $region40: #{set_block_wrapper_forward.1} parent=27 // pred_fallthru
          _
      $region28: #{set_block_wrapper_forward.1} parent=5 // pred_fallthru
        _
      %p2237 = scmp.le.s32.totalorder 2, %s15
      // Predicated region
      $region41: #{set_block_wrapper_forward.1} parent=5 // pred_check
        %p2238 = pneg %p2237
      $region42: #{set_block_wrapper_forward.1} parent=5 // pred_check_branch
        %2240 = sbr.rel (%p2238) target = $region44
      $region43: #{set_block_wrapper_forward.1} parent=5 // pred_region
        %s2241 = ssub.s32 %s15, 2
        // Predicated region
        $region45: #{set_block_wrapper_forward.1} parent=43 // pred_check
          %p2242 = pneg %p107
        $region46: #{set_block_wrapper_forward.1} parent=43 // pred_check_branch
          %2244 = sbr.rel (%p2242) target = $region48
        $region47: #{set_block_wrapper_forward.1} parent=43 // pred_region
          %s2245 = sand.u32 %s92, 1
          %s2246 = scalar_lea.sflag [#allocation5], %s2245
          %s2247 = sand.u32 %s92, 1
          %s2248 = smul.addr %s2247, 128
          %s2249 = scalar_lea.vmem [#allocation8], %s2248
          %2250 = dma.done %s2246, 2048
        $region48: #{set_block_wrapper_forward.1} parent=43 // pred_fallthru
          _
      $region44: #{set_block_wrapper_forward.1} parent=5 // pred_fallthru
        _
    $region6: #{set_block_wrapper_forward.1} parent=1 // loop_footer
      %s19 = sadd.s32 1, %s15
    $region7: #{set_block_wrapper_forward.1} parent=1 // loop_footer_branch
      %14 = sbr.rel target = $region3
    $region8: #{set_block_wrapper_forward.1} parent=1 // loop_exit
      _
    %2251 = vsyncpa [#allocation4], 1
    %s2252 = scalar_lea.sflag [#allocation4], 1
    %2253 = vsyncpa %s2252, 1
    %2254 = vsyncpa [#allocation7], 1
    %2255 = vsyncpa [#allocation5], 1
    %s2256 = scalar_lea.sflag [#allocation5], 1
    %2257 = vsyncpa %s2256, 1

</llo_original>
